<compile_context>
chip_gen: v7x
topology: tpu7x:2x2x1
jax: 0.10.0
libtpu: 0.0.40
codegen_flags: <defaults>
</compile_context>

<pallas_src>
import functools

import jax
import jax.numpy as jnp
from jax import lax
from jax.experimental import pallas as pl
from jax.experimental.pallas import tpu as pltpu


def _cdiv(a, b):
    return -(-a // b)


def _round_up(x, m):
    return ((x + m - 1) // m) * m


def _largest_divisor_leq(n, cap):
    cap = max(1, min(int(cap), int(n)))
    for p in range(cap, 0, -1):
        if n % p == 0:
            return p
    return 1


def _vmem_capacity_bytes():
    try:
        return int(pltpu.get_tpu_info().vmem_capacity_bytes)
    except Exception:
        return 64 * 1024 * 1024        # conservative fallback (v7x per-core VMEM)


# --------------------------------------------------------------------------- kernel
def _gram_pair_kernel(x1_ref, x2_ref, g1_ref, g2_ref, *,
                      per_split, n1, n2, kt1, kt2, tk1, tk2):
    """Accumulate the packed Gram matrices of two inputs over feature chunks."""
    c = pl.program_id(0)               # split ("core") index — parallel axis
    k = pl.program_id(1)               # chunk-within-split — reduction axis
    q = c * per_split + k              # global feature-chunk index

    @pl.when(k == 0)
    def _init():
        g1_ref[...] = jnp.zeros_like(g1_ref)
        g2_ref[...] = jnp.zeros_like(g2_ref)

    # NT gemm: contract the lane (feature) dim of both operands — no materialized
    # transpose; f32 accumulation regardless of the input dtype.
    nt = (((1,), (1,)), ((), ()))

    def _accum(x_ref, g_ref, n_chunks, k_total, tile_k):
        @pl.when(q < n_chunks)
        def _():
            x = x_ref[...]
            if k_total % tile_k != 0:
                # Ragged tail: zero lanes past the true feature length so the
                # unspecified out-of-bounds part of the last block is ignored.
                lanes = lax.broadcasted_iota(jnp.int32, x.shape, 1)
                valid = k_total - q * tile_k     # > 0 whenever q < n_chunks
                x = jnp.where(lanes < valid, x, 0)
            g_ref[...] += lax.dot_general(x, x, nt,
                                          preferred_element_type=jnp.float32)

    _accum(x1_ref, g1_ref, n1, kt1, tk1)
    _accum(x2_ref, g2_ref, n2, kt2, tk2)


# --------------------------------------------------------------------------- wrapper
def _plan_input(x, batch, row_target, per_block_budget, max_tile_k):
    """Pick the row-packing factor and lane-tile size for one flattened input."""
    d = x.shape[1]
    p = _largest_divisor_leq(d, max(1, row_target // max(batch, 1)))
    rows = batch * p
    kk = d // p
    xp = x.reshape(rows, kk)           # contiguous row-major: a free (bitcast) reshape
    itemsize = x.dtype.itemsize
    sublane = {4: 8, 2: 16, 1: 32}.get(itemsize, 8)
    padded_rows = _round_up(rows, sublane)

    tile_k = per_block_budget // max(padded_rows * itemsize, 1)
    tile_k = max(128, (tile_k // 128) * 128)
    if max_tile_k is not None:
        tile_k = max(128, min(tile_k, (int(max_tile_k) // 128) * 128))
    if kk <= tile_k:
        tile_k = kk                    # single chunk (block last dim == full dim is OK)
    n_chunks = _cdiv(kk, tile_k)

    blk_bytes = padded_rows * _round_up(tile_k, 128) * itemsize
    acc_bytes = _round_up(rows, 8) * _round_up(rows, 128) * 4
    return dict(xp=xp, d=d, p=p, rows=rows, kk=kk, tile_k=tile_k,
                n_chunks=n_chunks, blk_bytes=blk_bytes, acc_bytes=acc_bytes)


def diff_loss_pallas(input1, input2, *, row_target=256, max_tile_k=None):
    b = input1.shape[0]
    assert input2.shape[0] == b, "batch sizes must match"
    x1 = input1.reshape(b, -1)
    x2 = input2.reshape(b, -1)

    vmem_cap = _vmem_capacity_bytes()
    # 2 inputs x 2 pipeline buffers must stay well inside scoped VMEM:
    # ~8 MiB/block on 128 MiB parts (v5e/v6e), ~4 MiB/block on 64 MiB parts (v7x).
    per_block_budget = max(1 << 20, min(8 << 20, vmem_cap // 16))

    pln1 = _plan_input(x1, b, row_target, per_block_budget, max_tile_k)
    pln2 = _plan_input(x2, b, row_target, per_block_budget, max_tile_k)

    n_chunks = max(pln1["n_chunks"], pln2["n_chunks"])
    num_splits = min(2, n_chunks)      # one split per v7x TensorCore; harmless elsewhere
    per_split = _cdiv(n_chunks, num_splits)

    def in_map(n, ps):
        if n == 1:
            return lambda c, k: (0, 0)
        # Clamp so steps past this input's last chunk re-use the previous block
        # (no extra DMA); the kernel guards the accumulation with pl.when.
        return lambda c, k: (0, jnp.minimum(c * ps + k, n - 1))

    kernel = functools.partial(
        _gram_pair_kernel,
        per_split=per_split,
        n1=pln1["n_chunks"], n2=pln2["n_chunks"],
        kt1=pln1["kk"], kt2=pln2["kk"],
        tk1=pln1["tile_k"], tk2=pln2["tile_k"],
    )

    vmem_est = (2 * (pln1["blk_bytes"] + pln2["blk_bytes"])
                + 2 * (pln1["acc_bytes"] + pln2["acc_bytes"]))
    vmem_limit = min(int(vmem_cap * 0.9), max(32 << 20, vmem_est + (8 << 20)))

    g1p, g2p = pl.pallas_call(
        kernel,
        out_shape=(
            jax.ShapeDtypeStruct((num_splits, pln1["rows"], pln1["rows"]), jnp.float32),
            jax.ShapeDtypeStruct((num_splits, pln2["rows"], pln2["rows"]), jnp.float32),
        ),
        grid=(num_splits, per_split),
        in_specs=[
            pl.BlockSpec((pln1["rows"], pln1["tile_k"]), in_map(pln1["n_chunks"], per_split)),
            pl.BlockSpec((pln2["rows"], pln2["tile_k"]), in_map(pln2["n_chunks"], per_split)),
        ],
        out_specs=(
            # Output block index constant across the reduction axis -> the Gram
            # accumulator stays resident in VMEM for the whole per-split reduction.
            pl.BlockSpec((None, pln1["rows"], pln1["rows"]), lambda c, k: (c, 0, 0)),
            pl.BlockSpec((None, pln2["rows"], pln2["rows"]), lambda c, k: (c, 0, 0)),
        ),
        compiler_params=pltpu.CompilerParams(
            dimension_semantics=("parallel", "arbitrary"),
            vmem_limit_bytes=int(vmem_limit),
        ),
    )(pln1["xp"], pln2["xp"])

    # --- tiny O((B*p)^2) epilogue in plain JAX -------------------------------------
    def unpack(gp, p):
        g = jnp.sum(gp, axis=0) if num_splits > 1 else gp[0]
        # G[b,b'] = sum_i Gp[b*p+i, b'*p+i]  (trace of each p x p sub-block).
        return jnp.trace(g.reshape(b, p, b, p), axis1=1, axis2=3)

    g1 = unpack(g1p, pln1["p"])
    g2 = unpack(g2p, pln2["p"])
    eps = jnp.float32(1e-6)
    nrm1 = jnp.sqrt(jnp.diagonal(g1)) + eps          # ||x1_b|| + 1e-6
    nrm2 = jnp.sqrt(jnp.diagonal(g2)) + eps
    den = (nrm1 * nrm2)[:, None] * (nrm1 * nrm2)[None, :]
    return jnp.sum((g1 * g2) / den) / jnp.float32(pln1["d"] * pln2["d"])


# --------------------------------------------------------------------------- reference
def diff_loss_ref(input1, input2):
    # Pure-JAX reference matching the PyTorch DiffLoss forward (direct D1 x D2 path).
    b = input1.shape[0]
    x1 = input1.reshape(b, -1).astype(jnp.float32)
    x2 = input2.reshape(b, -1).astype(jnp.float32)
    x1n = x1 / (jnp.linalg.norm(x1, axis=1, keepdims=True) + 1e-6)
    x2n = x2 / (jnp.linalg.norm(x2, axis=1, keepdims=True) + 1e-6)
    c = lax.dot_general(x1n, x2n, (((0,), (0,)), ((), ())),
                        precision=lax.Precision.HIGHEST)      # (D1, D2) = x1n^T @ x2n
    return jnp.mean(c * c)


if __name__ == "__main__":
    key = jax.random.PRNGKey(0)
    keys = jax.random.split(key, 4)

    # Shapes consistent with the module: (batch, channels, H, W) flattened to (B, C*H*W).
    B, C, H, W = 2, 4, 16, 16
    x1 = jax.random.normal(keys[0], (B, C, H, W), dtype=jnp.float32)
    x2 = jax.random.normal(keys[1], (B, C, H, W), dtype=jnp.float32)
    ref = diff_loss_ref(x1, x2)

    # Default path: packed rows (B*p ~ 256), single chunk at this small size.
    out = diff_loss_pallas(x1, x2)
    jax.block_until_ready(out)
    assert jnp.allclose(out, ref, rtol=1e-3, atol=1e-9), (out, ref)

    # Multi-chunk + dual-split path (exercises accumulation across grid steps and
    # the per-split partial-Gram combine).
    out_tiled = diff_loss_pallas(x1, x2, row_target=8, max_tile_k=128)
    jax.block_until_ready(out_tiled)
    assert jnp.allclose(out_tiled, ref, rtol=1e-3, atol=1e-9), (out_tiled, ref)

    # Ragged feature dim (D = 300, not a 128-multiple): in-kernel tail mask, no jnp.pad.
    a = jax.random.normal(keys[2], (2, 3, 10, 10), dtype=jnp.float32)
    c_ = jax.random.normal(keys[3], (2, 3, 10, 10), dtype=jnp.float32)
    ref_r = diff_loss_ref(a, c_)
    out_r = diff_loss_pallas(a, c_, row_target=2, max_tile_k=128)
    jax.block_until_ready(out_r)
    assert jnp.allclose(out_r, ref_r, rtol=1e-3, atol=1e-9), (out_r, ref_r)

    # Unequal flattened feature dims (each input keeps its own tiling / chunk count).
    ref_mix = diff_loss_ref(x1, a)
    out_mix = diff_loss_pallas(x1, a)
    jax.block_until_ready(out_mix)
    assert jnp.allclose(out_mix, ref_mix, rtol=1e-3, atol=1e-9), (out_mix, ref_mix)

    # bf16 inputs stream at half the HBM bytes; MXU multiplies bf16, accumulates f32.
    x1b, x2b = x1.astype(jnp.bfloat16), x2.astype(jnp.bfloat16)
    ref_b = diff_loss_ref(x1b, x2b)
    out_b = diff_loss_pallas(x1b, x2b)
    jax.block_until_ready(out_b)
    assert jnp.allclose(out_b, ref_b, rtol=5e-2, atol=1e-8), (out_b, ref_b)

    print("KERNEL_OK")
</pallas_src>

<mosaic_0001>
module attributes {stable_mosaic.version = 11 : i64} {
  func.func @_gram_pair_kernel(%arg0: i32, %arg1: i32, %arg2: memref<256x8xf32, #tpu.memory_space<vmem>>, %arg3: memref<256x8xf32, #tpu.memory_space<vmem>>, %arg4: memref<1x256x256xf32, #tpu.memory_space<vmem>>, %arg5: memref<1x256x256xf32, #tpu.memory_space<vmem>>) attributes {dimension_semantics = [#tpu.dimension_semantics<parallel>, #tpu.dimension_semantics<arbitrary>], iteration_bounds = array<i64: 1, 1>, scalar_prefetch = 0 : i64, scratch_operands = 0 : i64, tpu.core_type = #tpu.core_type<tc>, window_params = [{pipeline_mode = #tpu.pipeline_mode<synchronous>, transform_indices = @transform_0, window_bounds = array<i64: 256, 8>}, {pipeline_mode = #tpu.pipeline_mode<synchronous>, transform_indices = @transform_1, window_bounds = array<i64: 256, 8>}, {transform_indices = @transform_2, window_bounds = array<i64: 1, 256, 256>}, {transform_indices = @transform_3, window_bounds = array<i64: 1, 256, 256>}]} {
    %c1_i32 = arith.constant 1 : i32
    %0 = arith.muli %arg0, %c1_i32 : i32
    %1 = arith.addi %0, %arg1 : i32
    %c0_i32 = arith.constant 0 : i32
    %2 = arith.cmpi eq, %arg1, %c0_i32 : i32
    %3 = arith.extui %2 : i1 to i32
    %c0_i32_0 = arith.constant 0 : i32
    %4 = arith.cmpi ne, %3, %c0_i32_0 : i32
    scf.if %4 {
      %cst = arith.constant 0.000000e+00 : f32
      %11 = vector.broadcast %cst : f32 to vector<256x256xf32>
      %c0 = arith.constant 0 : index
      %c0_5 = arith.constant 0 : index
      %c0_6 = arith.constant 0 : index
      %12 = vector.load %arg4[%c0, %c0_5, %c0_6] : memref<1x256x256xf32, #tpu.memory_space<vmem>>, vector<1x256x256xf32>
      %13 = vector.shape_cast %12 : vector<1x256x256xf32> to vector<256x256xf32>
      %14 = vector.shape_cast %11 : vector<256x256xf32> to vector<1x256x256xf32>
      tpu.vector_store %arg4[%c0, %c0_5, %c0_6], %14 {strides = array<i32>} : memref<1x256x256xf32, #tpu.memory_space<vmem>>, vector<1x256x256xf32>,
      %cst_7 = arith.constant 0.000000e+00 : f32
      %15 = vector.broadcast %cst_7 : f32 to vector<256x256xf32>
      %c0_8 = arith.constant 0 : index
      %c0_9 = arith.constant 0 : index
      %c0_10 = arith.constant 0 : index
      %16 = vector.load %arg5[%c0_8, %c0_9, %c0_10] : memref<1x256x256xf32, #tpu.memory_space<vmem>>, vector<1x256x256xf32>
      %17 = vector.shape_cast %16 : vector<1x256x256xf32> to vector<256x256xf32>
      %18 = vector.shape_cast %15 : vector<256x256xf32> to vector<1x256x256xf32>
      tpu.vector_store %arg5[%c0_8, %c0_9, %c0_10], %18 {strides = array<i32>} : memref<1x256x256xf32, #tpu.memory_space<vmem>>, vector<1x256x256xf32>,
    } else {
    }
    %c1_i32_1 = arith.constant 1 : i32
    %5 = arith.cmpi slt, %1, %c1_i32_1 : i32
    %6 = arith.extui %5 : i1 to i32
    %c0_i32_2 = arith.constant 0 : i32
    %7 = arith.cmpi ne, %6, %c0_i32_2 : i32
    scf.if %7 {
      %c0 = arith.constant 0 : index
      %c0_5 = arith.constant 0 : index
      %11 = vector.load %arg2[%c0, %c0_5] : memref<256x8xf32, #tpu.memory_space<vmem>>, vector<256x8xf32>
      %c0_6 = arith.constant 0 : index
      %c0_7 = arith.constant 0 : index
      %c0_8 = arith.constant 0 : index
      %12 = vector.load %arg4[%c0_6, %c0_7, %c0_8] : memref<1x256x256xf32, #tpu.memory_space<vmem>>, vector<1x256x256xf32>
      %13 = vector.shape_cast %12 : vector<1x256x256xf32> to vector<256x256xf32>
      %cst = arith.constant dense<0.000000e+00> : vector<256x256xf32>
      %14 = tpu.matmul %11, %11, %cst {dimension_numbers = #tpu.dot_dimension_numbers<[1], [1], [0], [0], [0, 0, 1, 0], [], []>} : vector<256x8xf32>, vector<256x8xf32>, vector<256x256xf32> -> vector<256x256xf32>
      %15 = arith.addf %13, %14 : vector<256x256xf32>
      %c0_9 = arith.constant 0 : index
      %c0_10 = arith.constant 0 : index
      %c0_11 = arith.constant 0 : index
      %16 = vector.load %arg4[%c0_9, %c0_10, %c0_11] : memref<1x256x256xf32, #tpu.memory_space<vmem>>, vector<1x256x256xf32>
      %17 = vector.shape_cast %16 : vector<1x256x256xf32> to vector<256x256xf32>
      %18 = vector.shape_cast %15 : vector<256x256xf32> to vector<1x256x256xf32>
      tpu.vector_store %arg4[%c0_9, %c0_10, %c0_11], %18 {strides = array<i32>} : memref<1x256x256xf32, #tpu.memory_space<vmem>>, vector<1x256x256xf32>,
    } else {
    }
    %c1_i32_3 = arith.constant 1 : i32
    %8 = arith.cmpi slt, %1, %c1_i32_3 : i32
    %9 = arith.extui %8 : i1 to i32
    %c0_i32_4 = arith.constant 0 : i32
    %10 = arith.cmpi ne, %9, %c0_i32_4 : i32
    scf.if %10 {
      %c0 = arith.constant 0 : index
      %c0_5 = arith.constant 0 : index
      %11 = vector.load %arg3[%c0, %c0_5] : memref<256x8xf32, #tpu.memory_space<vmem>>, vector<256x8xf32>
      %c0_6 = arith.constant 0 : index
      %c0_7 = arith.constant 0 : index
      %c0_8 = arith.constant 0 : index
      %12 = vector.load %arg5[%c0_6, %c0_7, %c0_8] : memref<1x256x256xf32, #tpu.memory_space<vmem>>, vector<1x256x256xf32>
      %13 = vector.shape_cast %12 : vector<1x256x256xf32> to vector<256x256xf32>
      %cst = arith.constant dense<0.000000e+00> : vector<256x256xf32>
      %14 = tpu.matmul %11, %11, %cst {dimension_numbers = #tpu.dot_dimension_numbers<[1], [1], [0], [0], [0, 0, 1, 0], [], []>} : vector<256x8xf32>, vector<256x8xf32>, vector<256x256xf32> -> vector<256x256xf32>
      %15 = arith.addf %13, %14 : vector<256x256xf32>
      %c0_9 = arith.constant 0 : index
      %c0_10 = arith.constant 0 : index
      %c0_11 = arith.constant 0 : index
      %16 = vector.load %arg5[%c0_9, %c0_10, %c0_11] : memref<1x256x256xf32, #tpu.memory_space<vmem>>, vector<1x256x256xf32>
      %17 = vector.shape_cast %16 : vector<1x256x256xf32> to vector<256x256xf32>
      %18 = vector.shape_cast %15 : vector<256x256xf32> to vector<1x256x256xf32>
      tpu.vector_store %arg5[%c0_9, %c0_10, %c0_11], %18 {strides = array<i32>} : memref<1x256x256xf32, #tpu.memory_space<vmem>>, vector<1x256x256xf32>,
    } else {
    }
    return
  }
  func.func @transform_0(%arg0: i32, %arg1: i32) -> (i32, i32) {
    %c0_i32 = arith.constant 0 : i32
    %c0_i32_0 = arith.constant 0 : i32
    %c0_i32_1 = arith.constant 0 : i32
    return %c0_i32, %c0_i32_0 : i32, i32
  }
  func.func @transform_1(%arg0: i32, %arg1: i32) -> (i32, i32) {
    %c0_i32 = arith.constant 0 : i32
    %c0_i32_0 = arith.constant 0 : i32
    %c0_i32_1 = arith.constant 0 : i32
    return %c0_i32, %c0_i32_0 : i32, i32
  }
  func.func @transform_2(%arg0: i32, %arg1: i32) -> (i32, i32, i32) {
    %c0_i32 = arith.constant 0 : i32
    %c0_i32_0 = arith.constant 0 : i32
    %c0_i32_1 = arith.constant 0 : i32
    return %arg0, %c0_i32, %c0_i32_0 : i32, i32, i32
  }
  func.func @transform_3(%arg0: i32, %arg1: i32) -> (i32, i32, i32) {
    %c0_i32 = arith.constant 0 : i32
    %c0_i32_0 = arith.constant 0 : i32
    %c0_i32_1 = arith.constant 0 : i32
    return %arg0, %c0_i32, %c0_i32_0 : i32, i32, i32
  }
}

</mosaic_0001>

<llo_original>
// kernel: tpu_custom_call.1
$region0: #{tpu_custom_call.1}
  #allocation0 [shape = 'u32[]', space=smem, size = 0x4, offset = 0x4, fixed_abs, tag = 'smem constant byte address 0x4 - core index']
  #allocation1 [shape = 'u32[144,128]{1,0:T(1,128)}', space=vmem, size = 0x12000, scoped, tag = 'internal scratch']
  %s0 = inlined_call_operand.vmem [shape: f32[256,8], index: 0, kind: input, shape index: {}]
  %s1 = inlined_call_operand.vmem [shape: f32[256,8], index: 1, kind: input, shape index: {}]
  %s2 = inlined_call_operand.hbm [shape: f32[1,256,256], index: 2, kind: output, shape index: {0}]
  %s3 = inlined_call_operand.hbm [shape: f32[1,256,256], index: 3, kind: output, shape index: {1}]
  %4 = xla_tuple %s2, %s3
  %s5 = sld [smem:[#allocation0]]
  $region34: #{tpu_custom_call.1} parent=0
    _
  %s7 = ssub.s32 1, %s5
  %s8 = scalar_select 0, %s7, %s5
  $region1: #{tpu_custom_call.1} parent=0
    #allocation2 [shape = 'u8[262144]{0}', space=vmem, size = 0x40000, scoped, tag = 'output window, operand 0, single buffered']
    #allocation3 [shape = 's32[1]{0}', space=sflag, size = 0x4, scoped, tag = 'scoped memory for tpu_custom_call.1']
    #allocation4 [shape = 'u8[262144]{0}', space=vmem, size = 0x40000, scoped, tag = 'output window, operand 1, single buffered']
    #allocation5 [shape = 's32[1]{0}', space=sflag, size = 0x4, scoped, tag = 'scoped memory for tpu_custom_call.1']
    %9 = vsyncpa [#allocation3], 0
    %10 = vsyncpa [#allocation5], 0
    // Predicated region
    $region2: #{tpu_custom_call.1} parent=1 // pred_check
      _
    $region3: #{tpu_custom_call.1} parent=1 // pred_check_branch
      %12 = sbr.rel (0) target = $region5
    $region4: #{tpu_custom_call.1} parent=1 // pred_region
      _
    $region5: #{tpu_custom_call.1} parent=1 // pred_fallthru
      _
    // Predicated region
    $region6: #{tpu_custom_call.1} parent=1 // pred_check
      _
    $region7: #{tpu_custom_call.1} parent=1 // pred_check_branch
      %14 = sbr.rel (0) target = $region9
    $region8: #{tpu_custom_call.1} parent=1 // pred_region
      _
    $region9: #{tpu_custom_call.1} parent=1 // pred_fallthru
      _
    %s15 = sadd.s32 0, 0
    %p16 = scmp.eq.s32.totalorder 0, 0
    // Predicated region
    $region10: #{tpu_custom_call.1} parent=1 // pred_check
      %p17 = pneg %p16
    $region11: #{tpu_custom_call.1} parent=1 // pred_check_branch
      %19 = sbr.rel (%p17) target = $region13
    $region12: #{tpu_custom_call.1} parent=1 // pred_region
      %20 = vst [vmem:[#allocation2] sm:$0xff] 0.0
      %21 = vst [vmem:[#allocation2 + $0x8] sm:$0xff] 0.0
      %22 = vst [vmem:[#allocation2 + $0x10] sm:$0xff] 0.0
      %23 = vst [vmem:[#allocation2 + $0x18] sm:$0xff] 0.0
      %24 = vst [vmem:[#allocation2 + $0x20] sm:$0xff] 0.0
      %25 = vst [vmem:[#allocation2 + $0x28] sm:$0xff] 0.0
      %26 = vst [vmem:[#allocation2 + $0x30] sm:$0xff] 0.0
      %27 = vst [vmem:[#allocation2 + $0x38] sm:$0xff] 0.0
      %28 = vst [vmem:[#allocation2 + $0x40] sm:$0xff] 0.0
      %29 = vst [vmem:[#allocation2 + $0x48] sm:$0xff] 0.0
      %30 = vst [vmem:[#allocation2 + $0x50] sm:$0xff] 0.0
      %31 = vst [vmem:[#allocation2 + $0x58] sm:$0xff] 0.0
      %32 = vst [vmem:[#allocation2 + $0x60] sm:$0xff] 0.0
      %33 = vst [vmem:[#allocation2 + $0x68] sm:$0xff] 0.0
      %34 = vst [vmem:[#allocation2 + $0x70] sm:$0xff] 0.0
      %35 = vst [vmem:[#allocation2 + $0x78] sm:$0xff] 0.0
      %36 = vst [vmem:[#allocation2 + $0x80] sm:$0xff] 0.0
      %37 = vst [vmem:[#allocation2 + $0x88] sm:$0xff] 0.0
      %38 = vst [vmem:[#allocation2 + $0x90] sm:$0xff] 0.0
      %39 = vst [vmem:[#allocation2 + $0x98] sm:$0xff] 0.0
      %40 = vst [vmem:[#allocation2 + $0xa0] sm:$0xff] 0.0
      %41 = vst [vmem:[#allocation2 + $0xa8] sm:$0xff] 0.0
      %42 = vst [vmem:[#allocation2 + $0xb0] sm:$0xff] 0.0
      %43 = vst [vmem:[#allocation2 + $0xb8] sm:$0xff] 0.0
      %44 = vst [vmem:[#allocation2 + $0xc0] sm:$0xff] 0.0
      %45 = vst [vmem:[#allocation2 + $0xc8] sm:$0xff] 0.0
      %46 = vst [vmem:[#allocation2 + $0xd0] sm:$0xff] 0.0
      %47 = vst [vmem:[#allocation2 + $0xd8] sm:$0xff] 0.0
      %48 = vst [vmem:[#allocation2 + $0xe0] sm:$0xff] 0.0
      %49 = vst [vmem:[#allocation2 + $0xe8] sm:$0xff] 0.0
      %50 = vst [vmem:[#allocation2 + $0xf0] sm:$0xff] 0.0
      %51 = vst [vmem:[#allocation2 + $0xf8] sm:$0xff] 0.0
      %52 = vst [vmem:[#allocation2 + $0x100] sm:$0xff] 0.0
      %53 = vst [vmem:[#allocation2 + $0x108] sm:$0xff] 0.0
      %54 = vst [vmem:[#allocation2 + $0x110] sm:$0xff] 0.0
      %55 = vst [vmem:[#allocation2 + $0x118] sm:$0xff] 0.0
      %56 = vst [vmem:[#allocation2 + $0x120] sm:$0xff] 0.0
      %57 = vst [vmem:[#allocation2 + $0x128] sm:$0xff] 0.0
      %58 = vst [vmem:[#allocation2 + $0x130] sm:$0xff] 0.0
      %59 = vst [vmem:[#allocation2 + $0x138] sm:$0xff] 0.0
      %60 = vst [vmem:[#allocation2 + $0x140] sm:$0xff] 0.0
      %61 = vst [vmem:[#allocation2 + $0x148] sm:$0xff] 0.0
      %62 = vst [vmem:[#allocation2 + $0x150] sm:$0xff] 0.0
      %63 = vst [vmem:[#allocation2 + $0x158] sm:$0xff] 0.0
      %64 = vst [vmem:[#allocation2 + $0x160] sm:$0xff] 0.0
      %65 = vst [vmem:[#allocation2 + $0x168] sm:$0xff] 0.0
      %66 = vst [vmem:[#allocation2 + $0x170] sm:$0xff] 0.0
      %67 = vst [vmem:[#allocation2 + $0x178] sm:$0xff] 0.0
      %68 = vst [vmem:[#allocation2 + $0x180] sm:$0xff] 0.0
      %69 = vst [vmem:[#allocation2 + $0x188] sm:$0xff] 0.0
      %70 = vst [vmem:[#allocation2 + $0x190] sm:$0xff] 0.0
      %71 = vst [vmem:[#allocation2 + $0x198] sm:$0xff] 0.0
      %72 = vst [vmem:[#allocation2 + $0x1a0] sm:$0xff] 0.0
      %73 = vst [vmem:[#allocation2 + $0x1a8] sm:$0xff] 0.0
      %74 = vst [vmem:[#allocation2 + $0x1b0] sm:$0xff] 0.0
      %75 = vst [vmem:[#allocation2 + $0x1b8] sm:$0xff] 0.0
      %76 = vst [vmem:[#allocation2 + $0x1c0] sm:$0xff] 0.0
      %77 = vst [vmem:[#allocation2 + $0x1c8] sm:$0xff] 0.0
      %78 = vst [vmem:[#allocation2 + $0x1d0] sm:$0xff] 0.0
      %79 = vst [vmem:[#allocation2 + $0x1d8] sm:$0xff] 0.0
      %80 = vst [vmem:[#allocation2 + $0x1e0] sm:$0xff] 0.0
      %81 = vst [vmem:[#allocation2 + $0x1e8] sm:$0xff] 0.0
      %82 = vst [vmem:[#allocation2 + $0x1f0] sm:$0xff] 0.0
      %83 = vst [vmem:[#allocation2 + $0x1f8] sm:$0xff] 0.0
      %84 = vst [vmem:[#allocation4] sm:$0xff] 0.0
      %85 = vst [vmem:[#allocation4 + $0x8] sm:$0xff] 0.0
      %86 = vst [vmem:[#allocation4 + $0x10] sm:$0xff] 0.0
      %87 = vst [vmem:[#allocation4 + $0x18] sm:$0xff] 0.0
      %88 = vst [vmem:[#allocation4 + $0x20] sm:$0xff] 0.0
      %89 = vst [vmem:[#allocation4 + $0x28] sm:$0xff] 0.0
      %90 = vst [vmem:[#allocation4 + $0x30] sm:$0xff] 0.0
      %91 = vst [vmem:[#allocation4 + $0x38] sm:$0xff] 0.0
      %92 = vst [vmem:[#allocation4 + $0x40] sm:$0xff] 0.0
      %93 = vst [vmem:[#allocation4 + $0x48] sm:$0xff] 0.0
      %94 = vst [vmem:[#allocation4 + $0x50] sm:$0xff] 0.0
      %95 = vst [vmem:[#allocation4 + $0x58] sm:$0xff] 0.0
      %96 = vst [vmem:[#allocation4 + $0x60] sm:$0xff] 0.0
      %97 = vst [vmem:[#allocation4 + $0x68] sm:$0xff] 0.0
      %98 = vst [vmem:[#allocation4 + $0x70] sm:$0xff] 0.0
      %99 = vst [vmem:[#allocation4 + $0x78] sm:$0xff] 0.0
      %100 = vst [vmem:[#allocation4 + $0x80] sm:$0xff] 0.0
      %101 = vst [vmem:[#allocation4 + $0x88] sm:$0xff] 0.0
      %102 = vst [vmem:[#allocation4 + $0x90] sm:$0xff] 0.0
      %103 = vst [vmem:[#allocation4 + $0x98] sm:$0xff] 0.0
      %104 = vst [vmem:[#allocation4 + $0xa0] sm:$0xff] 0.0
      %105 = vst [vmem:[#allocation4 + $0xa8] sm:$0xff] 0.0
      %106 = vst [vmem:[#allocation4 + $0xb0] sm:$0xff] 0.0
      %107 = vst [vmem:[#allocation4 + $0xb8] sm:$0xff] 0.0
      %108 = vst [vmem:[#allocation4 + $0xc0] sm:$0xff] 0.0
      %109 = vst [vmem:[#allocation4 + $0xc8] sm:$0xff] 0.0
      %110 = vst [vmem:[#allocation4 + $0xd0] sm:$0xff] 0.0
      %111 = vst [vmem:[#allocation4 + $0xd8] sm:$0xff] 0.0
      %112 = vst [vmem:[#allocation4 + $0xe0] sm:$0xff] 0.0
      %113 = vst [vmem:[#allocation4 + $0xe8] sm:$0xff] 0.0
      %114 = vst [vmem:[#allocation4 + $0xf0] sm:$0xff] 0.0
      %115 = vst [vmem:[#allocation4 + $0xf8] sm:$0xff] 0.0
      %116 = vst [vmem:[#allocation4 + $0x100] sm:$0xff] 0.0
      %117 = vst [vmem:[#allocation4 + $0x108] sm:$0xff] 0.0
      %118 = vst [vmem:[#allocation4 + $0x110] sm:$0xff] 0.0
      %119 = vst [vmem:[#allocation4 + $0x118] sm:$0xff] 0.0
      %120 = vst [vmem:[#allocation4 + $0x120] sm:$0xff] 0.0
      %121 = vst [vmem:[#allocation4 + $0x128] sm:$0xff] 0.0
      %122 = vst [vmem:[#allocation4 + $0x130] sm:$0xff] 0.0
      %123 = vst [vmem:[#allocation4 + $0x138] sm:$0xff] 0.0
      %124 = vst [vmem:[#allocation4 + $0x140] sm:$0xff] 0.0
      %125 = vst [vmem:[#allocation4 + $0x148] sm:$0xff] 0.0
      %126 = vst [vmem:[#allocation4 + $0x150] sm:$0xff] 0.0
      %127 = vst [vmem:[#allocation4 + $0x158] sm:$0xff] 0.0
      %128 = vst [vmem:[#allocation4 + $0x160] sm:$0xff] 0.0
      %129 = vst [vmem:[#allocation4 + $0x168] sm:$0xff] 0.0
      %130 = vst [vmem:[#allocation4 + $0x170] sm:$0xff] 0.0
      %131 = vst [vmem:[#allocation4 + $0x178] sm:$0xff] 0.0
      %132 = vst [vmem:[#allocation4 + $0x180] sm:$0xff] 0.0
      %133 = vst [vmem:[#allocation4 + $0x188] sm:$0xff] 0.0
      %134 = vst [vmem:[#allocation4 + $0x190] sm:$0xff] 0.0
      %135 = vst [vmem:[#allocation4 + $0x198] sm:$0xff] 0.0
      %136 = vst [vmem:[#allocation4 + $0x1a0] sm:$0xff] 0.0
      %137 = vst [vmem:[#allocation4 + $0x1a8] sm:$0xff] 0.0
      %138 = vst [vmem:[#allocation4 + $0x1b0] sm:$0xff] 0.0
      %139 = vst [vmem:[#allocation4 + $0x1b8] sm:$0xff] 0.0
      %140 = vst [vmem:[#allocation4 + $0x1c0] sm:$0xff] 0.0
      %141 = vst [vmem:[#allocation4 + $0x1c8] sm:$0xff] 0.0
      %142 = vst [vmem:[#allocation4 + $0x1d0] sm:$0xff] 0.0
      %143 = vst [vmem:[#allocation4 + $0x1d8] sm:$0xff] 0.0
      %144 = vst [vmem:[#allocation4 + $0x1e0] sm:$0xff] 0.0
      %145 = vst [vmem:[#allocation4 + $0x1e8] sm:$0xff] 0.0
      %146 = vst [vmem:[#allocation4 + $0x1f0] sm:$0xff] 0.0
      %147 = vst [vmem:[#allocation4 + $0x1f8] sm:$0xff] 0.0
    $region13: #{tpu_custom_call.1} parent=1 // pred_fallthru
      _
    %p148 = scmp.lt.s32.totalorder %s15, 1
    // Predicated region
    $region14: #{tpu_custom_call.1} parent=1 // pred_check
      %p149 = pneg %p148
    $region15: #{tpu_custom_call.1} parent=1 // pred_check_branch
      %151 = sbr.rel (%p149) target = $region17
    $region16: #{tpu_custom_call.1} parent=1 // pred_region
      %v152 = vld [vmem:[%s0] sm:$0xff]
      %v153 = vld [vmem:[%s0 + $0x8] sm:$0xff]
      %v154 = vld [vmem:[%s0 + $0x10] sm:$0xff]
      %v155 = vld [vmem:[%s0 + $0x18] sm:$0xff]
      %v156 = vld [vmem:[%s0 + $0x20] sm:$0xff]
      %v157 = vld [vmem:[%s0 + $0x28] sm:$0xff]
      %v158 = vld [vmem:[%s0 + $0x30] sm:$0xff]
      %v159 = vld [vmem:[%s0 + $0x38] sm:$0xff]
      %v160 = vld [vmem:[%s0 + $0x40] sm:$0xff]
      %v161 = vld [vmem:[%s0 + $0x48] sm:$0xff]
      %v162 = vld [vmem:[%s0 + $0x50] sm:$0xff]
      %v163 = vld [vmem:[%s0 + $0x58] sm:$0xff]
      %v164 = vld [vmem:[%s0 + $0x60] sm:$0xff]
      %v165 = vld [vmem:[%s0 + $0x68] sm:$0xff]
      %v166 = vld [vmem:[%s0 + $0x70] sm:$0xff]
      %v167 = vld [vmem:[%s0 + $0x78] sm:$0xff]
      %v168 = vld [vmem:[%s0 + $0x80] sm:$0xff]
      %v169 = vld [vmem:[%s0 + $0x88] sm:$0xff]
      %v170 = vld [vmem:[%s0 + $0x90] sm:$0xff]
      %v171 = vld [vmem:[%s0 + $0x98] sm:$0xff]
      %v172 = vld [vmem:[%s0 + $0xa0] sm:$0xff]
      %v173 = vld [vmem:[%s0 + $0xa8] sm:$0xff]
      %v174 = vld [vmem:[%s0 + $0xb0] sm:$0xff]
      %v175 = vld [vmem:[%s0 + $0xb8] sm:$0xff]
      %v176 = vld [vmem:[%s0 + $0xc0] sm:$0xff]
      %v177 = vld [vmem:[%s0 + $0xc8] sm:$0xff]
      %v178 = vld [vmem:[%s0 + $0xd0] sm:$0xff]
      %v179 = vld [vmem:[%s0 + $0xd8] sm:$0xff]
      %v180 = vld [vmem:[%s0 + $0xe0] sm:$0xff]
      %v181 = vld [vmem:[%s0 + $0xe8] sm:$0xff]
      %v182 = vld [vmem:[%s0 + $0xf0] sm:$0xff]
      %v183 = vld [vmem:[%s0 + $0xf8] sm:$0xff]
      %v184 = vld [vmem:[#allocation2] sm:$0xff]
      %v185 = vld [vmem:[#allocation2 + $0x8] sm:$0xff]
      %v186 = vld [vmem:[#allocation2 + $0x10] sm:$0xff]
      %v187 = vld [vmem:[#allocation2 + $0x18] sm:$0xff]
      %v188 = vld [vmem:[#allocation2 + $0x20] sm:$0xff]
      %v189 = vld [vmem:[#allocation2 + $0x28] sm:$0xff]
      %v190 = vld [vmem:[#allocation2 + $0x30] sm:$0xff]
      %v191 = vld [vmem:[#allocation2 + $0x38] sm:$0xff]
      %v192 = vld [vmem:[#allocation2 + $0x40] sm:$0xff]
      %v193 = vld [vmem:[#allocation2 + $0x48] sm:$0xff]
      %v194 = vld [vmem:[#allocation2 + $0x50] sm:$0xff]
      %v195 = vld [vmem:[#allocation2 + $0x58] sm:$0xff]
      %v196 = vld [vmem:[#allocation2 + $0x60] sm:$0xff]
      %v197 = vld [vmem:[#allocation2 + $0x68] sm:$0xff]
      %v198 = vld [vmem:[#allocation2 + $0x70] sm:$0xff]
      %v199 = vld [vmem:[#allocation2 + $0x78] sm:$0xff]
      %v200 = vld [vmem:[#allocation2 + $0x80] sm:$0xff]
      %v201 = vld [vmem:[#allocation2 + $0x88] sm:$0xff]
      %v202 = vld [vmem:[#allocation2 + $0x90] sm:$0xff]
      %v203 = vld [vmem:[#allocation2 + $0x98] sm:$0xff]
      %v204 = vld [vmem:[#allocation2 + $0xa0] sm:$0xff]
      %v205 = vld [vmem:[#allocation2 + $0xa8] sm:$0xff]
      %v206 = vld [vmem:[#allocation2 + $0xb0] sm:$0xff]
      %v207 = vld [vmem:[#allocation2 + $0xb8] sm:$0xff]
      %v208 = vld [vmem:[#allocation2 + $0xc0] sm:$0xff]
      %v209 = vld [vmem:[#allocation2 + $0xc8] sm:$0xff]
      %v210 = vld [vmem:[#allocation2 + $0xd0] sm:$0xff]
      %v211 = vld [vmem:[#allocation2 + $0xd8] sm:$0xff]
      %v212 = vld [vmem:[#allocation2 + $0xe0] sm:$0xff]
      %v213 = vld [vmem:[#allocation2 + $0xe8] sm:$0xff]
      %v214 = vld [vmem:[#allocation2 + $0xf0] sm:$0xff]
      %v215 = vld [vmem:[#allocation2 + $0xf8] sm:$0xff]
      %v216 = vld [vmem:[#allocation2 + $0x100] sm:$0xff]
      %v217 = vld [vmem:[#allocation2 + $0x108] sm:$0xff]
      %v218 = vld [vmem:[#allocation2 + $0x110] sm:$0xff]
      %v219 = vld [vmem:[#allocation2 + $0x118] sm:$0xff]
      %v220 = vld [vmem:[#allocation2 + $0x120] sm:$0xff]
      %v221 = vld [vmem:[#allocation2 + $0x128] sm:$0xff]
      %v222 = vld [vmem:[#allocation2 + $0x130] sm:$0xff]
      %v223 = vld [vmem:[#allocation2 + $0x138] sm:$0xff]
      %v224 = vld [vmem:[#allocation2 + $0x140] sm:$0xff]
      %v225 = vld [vmem:[#allocation2 + $0x148] sm:$0xff]
      %v226 = vld [vmem:[#allocation2 + $0x150] sm:$0xff]
      %v227 = vld [vmem:[#allocation2 + $0x158] sm:$0xff]
      %v228 = vld [vmem:[#allocation2 + $0x160] sm:$0xff]
      %v229 = vld [vmem:[#allocation2 + $0x168] sm:$0xff]
      %v230 = vld [vmem:[#allocation2 + $0x170] sm:$0xff]
      %v231 = vld [vmem:[#allocation2 + $0x178] sm:$0xff]
      %v232 = vld [vmem:[#allocation2 + $0x180] sm:$0xff]
      %v233 = vld [vmem:[#allocation2 + $0x188] sm:$0xff]
      %v234 = vld [vmem:[#allocation2 + $0x190] sm:$0xff]
      %v235 = vld [vmem:[#allocation2 + $0x198] sm:$0xff]
      %v236 = vld [vmem:[#allocation2 + $0x1a0] sm:$0xff]
      %v237 = vld [vmem:[#allocation2 + $0x1a8] sm:$0xff]
      %v238 = vld [vmem:[#allocation2 + $0x1b0] sm:$0xff]
      %v239 = vld [vmem:[#allocation2 + $0x1b8] sm:$0xff]
      %v240 = vld [vmem:[#allocation2 + $0x1c0] sm:$0xff]
      %v241 = vld [vmem:[#allocation2 + $0x1c8] sm:$0xff]
      %v242 = vld [vmem:[#allocation2 + $0x1d0] sm:$0xff]
      %v243 = vld [vmem:[#allocation2 + $0x1d8] sm:$0xff]
      %v244 = vld [vmem:[#allocation2 + $0x1e0] sm:$0xff]
      %v245 = vld [vmem:[#allocation2 + $0x1e8] sm:$0xff]
      %v246 = vld [vmem:[#allocation2 + $0x1f0] sm:$0xff]
      %v247 = vld [vmem:[#allocation2 + $0x1f8] sm:$0xff]
      %vm248 = vcmask 64512
      %v250 = vsel %vm248, %v152, 0
      %v253 = vsel %vm248, %v153, 0
      %v256 = vsel %vm248, %v154, 0
      %v259 = vsel %vm248, %v155, 0
      %v262 = vsel %vm248, %v156, 0
      %v265 = vsel %vm248, %v157, 0
      %v268 = vsel %vm248, %v158, 0
      %v271 = vsel %vm248, %v159, 0
      %v274 = vsel %vm248, %v160, 0
      %v277 = vsel %vm248, %v161, 0
      %v280 = vsel %vm248, %v162, 0
      %v283 = vsel %vm248, %v163, 0
      %v286 = vsel %vm248, %v164, 0
      %v289 = vsel %vm248, %v165, 0
      %v292 = vsel %vm248, %v166, 0
      %v295 = vsel %vm248, %v167, 0
      %v298 = vsel %vm248, %v168, 0
      %v301 = vsel %vm248, %v169, 0
      %v304 = vsel %vm248, %v170, 0
      %v307 = vsel %vm248, %v171, 0
      %v310 = vsel %vm248, %v172, 0
      %v313 = vsel %vm248, %v173, 0
      %v316 = vsel %vm248, %v174, 0
      %v319 = vsel %vm248, %v175, 0
      %v322 = vsel %vm248, %v176, 0
      %v325 = vsel %vm248, %v177, 0
      %v328 = vsel %vm248, %v178, 0
      %v331 = vsel %vm248, %v179, 0
      %v334 = vsel %vm248, %v180, 0
      %v337 = vsel %vm248, %v181, 0
      %v340 = vsel %vm248, %v182, 0
      %v343 = vsel %vm248, %v183, 0
      %345 = vmatprep.subr.mxu0 0.0
      %346 = vmatpush1.xpose.msra.mxu0 %v250
      %347 = vmatprep.subr.mxu0 0.0
      %348 = vmatpush1.xpose.msra.mxu0 %v253
      %349 = vmatprep.subr.mxu0 0.0
      %350 = vmatpush1.xpose.msra.mxu0 %v256
      %351 = vmatprep.subr.mxu0 0.0
      %352 = vmatpush1.xpose.msra.mxu0 %v259
      %353 = vmatprep.subr.mxu0 0.0
      %354 = vmatpush1.xpose.msra.mxu0 %v262
      %355 = vmatprep.subr.mxu0 0.0
      %356 = vmatpush1.xpose.msra.mxu0 %v265
      %357 = vmatprep.subr.mxu0 0.0
      %358 = vmatpush1.xpose.msra.mxu0 %v268
      %359 = vmatprep.subr.mxu0 0.0
      %360 = vmatpush1.xpose.msra.mxu0 %v271
      %361 = vmatprep.subr.mxu0 0.0
      %362 = vmatpush1.xpose.msra.mxu0 %v274
      %363 = vmatprep.subr.mxu0 0.0
      %364 = vmatpush1.xpose.msra.mxu0 %v277
      %365 = vmatprep.subr.mxu0 0.0
      %366 = vmatpush1.xpose.msra.mxu0 %v280
      %367 = vmatprep.subr.mxu0 0.0
      %368 = vmatpush1.xpose.msra.mxu0 %v283
      %369 = vmatprep.subr.mxu0 0.0
      %370 = vmatpush1.xpose.msra.mxu0 %v286
      %371 = vmatprep.subr.mxu0 0.0
      %372 = vmatpush1.xpose.msra.mxu0 %v289
      %373 = vmatprep.subr.mxu0 0.0
      %374 = vmatpush1.xpose.msra.mxu0 %v292
      %375 = vmatprep.subr.mxu0 0.0
      %376 = vmatpush1.xpose.msra.mxu0 %v295
      %377 = vmatprep.subr.mxu0 0.0
      %378 = vmatpush1.xpose.msra.mxu0 %v298
      %379 = vmatprep.subr.mxu0 0.0
      %380 = vmatpush1.xpose.msra.mxu0 %v301
      %381 = vmatprep.subr.mxu0 0.0
      %382 = vmatpush1.xpose.msra.mxu0 %v304
      %383 = vmatprep.subr.mxu0 0.0
      %384 = vmatpush1.xpose.msra.mxu0 %v307
      %385 = vmatprep.subr.mxu0 0.0
      %386 = vmatpush1.xpose.msra.mxu0 %v310
      %387 = vmatprep.subr.mxu0 0.0
      %388 = vmatpush1.xpose.msra.mxu0 %v313
      %389 = vmatprep.subr.mxu0 0.0
      %390 = vmatpush1.xpose.msra.mxu0 %v316
      %391 = vmatprep.subr.mxu0 0.0
      %392 = vmatpush1.xpose.msra.mxu0 %v319
      %393 = vmatprep.subr.mxu0 0.0
      %394 = vmatpush1.xpose.msra.mxu0 %v322
      %395 = vmatprep.subr.mxu0 0.0
      %396 = vmatpush1.xpose.msra.mxu0 %v325
      %397 = vmatprep.subr.mxu0 0.0
      %398 = vmatpush1.xpose.msra.mxu0 %v328
      %399 = vmatprep.subr.mxu0 0.0
      %400 = vmatpush1.xpose.msra.mxu0 %v331
      %401 = vmatprep.subr.mxu0 0.0
      %402 = vmatpush1.xpose.msra.mxu0 %v334
      %403 = vmatprep.subr.mxu0 0.0
      %404 = vmatpush1.xpose.msra.mxu0 %v337
      %405 = vmatprep.subr.mxu0 0.0
      %406 = vmatpush1.xpose.msra.mxu0 %v340
      %407 = vmatprep.subr.mxu0 0.0
      %408 = vmatpush1.xpose.msra.mxu0 %v343
      %409 = vmatprep.mubr.f32.mxu0 0.0
      %410 = vmatmul.mubr.f32.gmra.mrb[0].mxu0 %v250
      %v411 = vpop.f32.mrb[0].mxu0
      %v412 = vadd.f32 0.0, %v411
      %v413 = vpop.f32.mrb[0].mxu0
      %v414 = vadd.f32 0.0, %v413
      %415 = vmatprep.mubr.f32.mxu0 0.0
      %416 = vmatmul.mubr.f32.gmra.mrb[0].mxu0 %v253
      %v417 = vpop.f32.mrb[0].mxu0
      %v418 = vadd.f32 0.0, %v417
      %v419 = vpop.f32.mrb[0].mxu0
      %v420 = vadd.f32 0.0, %v419
      %421 = vmatprep.mubr.f32.mxu0 0.0
      %422 = vmatmul.mubr.f32.gmra.mrb[0].mxu0 %v256
      %v423 = vpop.f32.mrb[0].mxu0
      %v424 = vadd.f32 0.0, %v423
      %v425 = vpop.f32.mrb[0].mxu0
      %v426 = vadd.f32 0.0, %v425
      %427 = vmatprep.mubr.f32.mxu0 0.0
      %428 = vmatmul.mubr.f32.gmra.mrb[0].mxu0 %v259
      %v429 = vpop.f32.mrb[0].mxu0
      %v430 = vadd.f32 0.0, %v429
      %v431 = vpop.f32.mrb[0].mxu0
      %v432 = vadd.f32 0.0, %v431
      %433 = vmatprep.mubr.f32.mxu0 0.0
      %434 = vmatmul.mubr.f32.gmra.mrb[0].mxu0 %v262
      %v435 = vpop.f32.mrb[0].mxu0
      %v436 = vadd.f32 0.0, %v435
      %v437 = vpop.f32.mrb[0].mxu0
      %v438 = vadd.f32 0.0, %v437
      %439 = vmatprep.mubr.f32.mxu0 0.0
      %440 = vmatmul.mubr.f32.gmra.mrb[0].mxu0 %v265
      %v441 = vpop.f32.mrb[0].mxu0
      %v442 = vadd.f32 0.0, %v441
      %v443 = vpop.f32.mrb[0].mxu0
      %v444 = vadd.f32 0.0, %v443
      %445 = vmatprep.mubr.f32.mxu0 0.0
      %446 = vmatmul.mubr.f32.gmra.mrb[0].mxu0 %v268
      %v447 = vpop.f32.mrb[0].mxu0
      %v448 = vadd.f32 0.0, %v447
      %v449 = vpop.f32.mrb[0].mxu0
      %v450 = vadd.f32 0.0, %v449
      %451 = vmatprep.mubr.f32.mxu0 0.0
      %452 = vmatmul.mubr.f32.gmra.mrb[0].mxu0 %v271
      %v453 = vpop.f32.mrb[0].mxu0
      %v454 = vadd.f32 0.0, %v453
      %v455 = vpop.f32.mrb[0].mxu0
      %v456 = vadd.f32 0.0, %v455
      %457 = vmatprep.mubr.f32.mxu0 0.0
      %458 = vmatmul.mubr.f32.gmra.mrb[0].mxu0 %v274
      %v459 = vpop.f32.mrb[0].mxu0
      %v460 = vadd.f32 0.0, %v459
      %v461 = vpop.f32.mrb[0].mxu0
      %v462 = vadd.f32 0.0, %v461
      %463 = vmatprep.mubr.f32.mxu0 0.0
      %464 = vmatmul.mubr.f32.gmra.mrb[0].mxu0 %v277
      %v465 = vpop.f32.mrb[0].mxu0
      %v466 = vadd.f32 0.0, %v465
      %v467 = vpop.f32.mrb[0].mxu0
      %v468 = vadd.f32 0.0, %v467
      %469 = vmatprep.mubr.f32.mxu0 0.0
      %470 = vmatmul.mubr.f32.gmra.mrb[0].mxu0 %v280
      %v471 = vpop.f32.mrb[0].mxu0
      %v472 = vadd.f32 0.0, %v471
      %v473 = vpop.f32.mrb[0].mxu0
      %v474 = vadd.f32 0.0, %v473
      %475 = vmatprep.mubr.f32.mxu0 0.0
      %476 = vmatmul.mubr.f32.gmra.mrb[0].mxu0 %v283
      %v477 = vpop.f32.mrb[0].mxu0
      %v478 = vadd.f32 0.0, %v477
      %v479 = vpop.f32.mrb[0].mxu0
      %v480 = vadd.f32 0.0, %v479
      %481 = vmatprep.mubr.f32.mxu0 0.0
      %482 = vmatmul.mubr.f32.gmra.mrb[0].mxu0 %v286
      %v483 = vpop.f32.mrb[0].mxu0
      %v484 = vadd.f32 0.0, %v483
      %v485 = vpop.f32.mrb[0].mxu0
      %v486 = vadd.f32 0.0, %v485
      %487 = vmatprep.mubr.f32.mxu0 0.0
      %488 = vmatmul.mubr.f32.gmra.mrb[0].mxu0 %v289
      %v489 = vpop.f32.mrb[0].mxu0
      %v490 = vadd.f32 0.0, %v489
      %v491 = vpop.f32.mrb[0].mxu0
      %v492 = vadd.f32 0.0, %v491
      %493 = vmatprep.mubr.f32.mxu0 0.0
      %494 = vmatmul.mubr.f32.gmra.mrb[0].mxu0 %v292
      %v495 = vpop.f32.mrb[0].mxu0
      %v496 = vadd.f32 0.0, %v495
      %v497 = vpop.f32.mrb[0].mxu0
      %v498 = vadd.f32 0.0, %v497
      %499 = vmatprep.mubr.f32.mxu0 0.0
      %500 = vmatmul.mubr.f32.gmra.mrb[0].mxu0 %v295
      %v501 = vpop.f32.mrb[0].mxu0
      %v502 = vadd.f32 0.0, %v501
      %v503 = vpop.f32.mrb[0].mxu0
      %v504 = vadd.f32 0.0, %v503
      %505 = vmatprep.mubr.f32.mxu0 0.0
      %506 = vmatmul.mubr.f32.gmra.mrb[0].mxu0 %v298
      %v507 = vpop.f32.mrb[0].mxu0
      %v508 = vadd.f32 0.0, %v507
      %v509 = vpop.f32.mrb[0].mxu0
      %v510 = vadd.f32 0.0, %v509
      %511 = vmatprep.mubr.f32.mxu0 0.0
      %512 = vmatmul.mubr.f32.gmra.mrb[0].mxu0 %v301
      %v513 = vpop.f32.mrb[0].mxu0
      %v514 = vadd.f32 0.0, %v513
      %v515 = vpop.f32.mrb[0].mxu0
      %v516 = vadd.f32 0.0, %v515
      %517 = vmatprep.mubr.f32.mxu0 0.0
      %518 = vmatmul.mubr.f32.gmra.mrb[0].mxu0 %v304
      %v519 = vpop.f32.mrb[0].mxu0
      %v520 = vadd.f32 0.0, %v519
      %v521 = vpop.f32.mrb[0].mxu0
      %v522 = vadd.f32 0.0, %v521
      %523 = vmatprep.mubr.f32.mxu0 0.0
      %524 = vmatmul.mubr.f32.gmra.mrb[0].mxu0 %v307
      %v525 = vpop.f32.mrb[0].mxu0
      %v526 = vadd.f32 0.0, %v525
      %v527 = vpop.f32.mrb[0].mxu0
      %v528 = vadd.f32 0.0, %v527
      %529 = vmatprep.mubr.f32.mxu0 0.0
      %530 = vmatmul.mubr.f32.gmra.mrb[0].mxu0 %v310
      %v531 = vpop.f32.mrb[0].mxu0
      %v532 = vadd.f32 0.0, %v531
      %v533 = vpop.f32.mrb[0].mxu0
      %v534 = vadd.f32 0.0, %v533
      %535 = vmatprep.mubr.f32.mxu0 0.0
      %536 = vmatmul.mubr.f32.gmra.mrb[0].mxu0 %v313
      %v537 = vpop.f32.mrb[0].mxu0
      %v538 = vadd.f32 0.0, %v537
      %v539 = vpop.f32.mrb[0].mxu0
      %v540 = vadd.f32 0.0, %v539
      %541 = vmatprep.mubr.f32.mxu0 0.0
      %542 = vmatmul.mubr.f32.gmra.mrb[0].mxu0 %v316
      %v543 = vpop.f32.mrb[0].mxu0
      %v544 = vadd.f32 0.0, %v543
      %v545 = vpop.f32.mrb[0].mxu0
      %v546 = vadd.f32 0.0, %v545
      %547 = vmatprep.mubr.f32.mxu0 0.0
      %548 = vmatmul.mubr.f32.gmra.mrb[0].mxu0 %v319
      %v549 = vpop.f32.mrb[0].mxu0
      %v550 = vadd.f32 0.0, %v549
      %v551 = vpop.f32.mrb[0].mxu0
      %v552 = vadd.f32 0.0, %v551
      %553 = vmatprep.mubr.f32.mxu0 0.0
      %554 = vmatmul.mubr.f32.gmra.mrb[0].mxu0 %v322
      %v555 = vpop.f32.mrb[0].mxu0
      %v556 = vadd.f32 0.0, %v555
      %v557 = vpop.f32.mrb[0].mxu0
      %v558 = vadd.f32 0.0, %v557
      %559 = vmatprep.mubr.f32.mxu0 0.0
      %560 = vmatmul.mubr.f32.gmra.mrb[0].mxu0 %v325
      %v561 = vpop.f32.mrb[0].mxu0
      %v562 = vadd.f32 0.0, %v561
      %v563 = vpop.f32.mrb[0].mxu0
      %v564 = vadd.f32 0.0, %v563
      %565 = vmatprep.mubr.f32.mxu0 0.0
      %566 = vmatmul.mubr.f32.gmra.mrb[0].mxu0 %v328
      %v567 = vpop.f32.mrb[0].mxu0
      %v568 = vadd.f32 0.0, %v567
      %v569 = vpop.f32.mrb[0].mxu0
      %v570 = vadd.f32 0.0, %v569
      %571 = vmatprep.mubr.f32.mxu0 0.0
      %572 = vmatmul.mubr.f32.gmra.mrb[0].mxu0 %v331
      %v573 = vpop.f32.mrb[0].mxu0
      %v574 = vadd.f32 0.0, %v573
      %v575 = vpop.f32.mrb[0].mxu0
      %v576 = vadd.f32 0.0, %v575
      %577 = vmatprep.mubr.f32.mxu0 0.0
      %578 = vmatmul.mubr.f32.gmra.mrb[0].mxu0 %v334
      %v579 = vpop.f32.mrb[0].mxu0
      %v580 = vadd.f32 0.0, %v579
      %v581 = vpop.f32.mrb[0].mxu0
      %v582 = vadd.f32 0.0, %v581
      %583 = vmatprep.mubr.f32.mxu0 0.0
      %584 = vmatmul.mubr.f32.gmra.mrb[0].mxu0 %v337
      %v585 = vpop.f32.mrb[0].mxu0
      %v586 = vadd.f32 0.0, %v585
      %v587 = vpop.f32.mrb[0].mxu0
      %v588 = vadd.f32 0.0, %v587
      %589 = vmatprep.mubr.f32.mxu0 0.0
      %590 = vmatmul.mubr.f32.gmra.mrb[0].mxu0 %v340
      %v591 = vpop.f32.mrb[0].mxu0
      %v592 = vadd.f32 0.0, %v591
      %v593 = vpop.f32.mrb[0].mxu0
      %v594 = vadd.f32 0.0, %v593
      %595 = vmatprep.mubr.f32.mxu0 0.0
      %596 = vmatmul.mubr.f32.gmra.mrb[0].mxu0 %v343
      %v597 = vpop.f32.mrb[0].mxu0
      %v598 = vadd.f32 0.0, %v597
      %v599 = vpop.f32.mrb[0].mxu0
      %v600 = vadd.f32 0.0, %v599
      %601 = vdwg.mxu0
      %v602 = vadd.f32 %v184, %v412
      %v603 = vadd.f32 %v185, %v414
      %v604 = vadd.f32 %v186, %v418
      %v605 = vadd.f32 %v187, %v420
      %v606 = vadd.f32 %v188, %v424
      %v607 = vadd.f32 %v189, %v426
      %v608 = vadd.f32 %v190, %v430
      %v609 = vadd.f32 %v191, %v432
      %v610 = vadd.f32 %v192, %v436
      %v611 = vadd.f32 %v193, %v438
      %v612 = vadd.f32 %v194, %v442
      %v613 = vadd.f32 %v195, %v444
      %v614 = vadd.f32 %v196, %v448
      %v615 = vadd.f32 %v197, %v450
      %v616 = vadd.f32 %v198, %v454
      %v617 = vadd.f32 %v199, %v456
      %v618 = vadd.f32 %v200, %v460
      %v619 = vadd.f32 %v201, %v462
      %v620 = vadd.f32 %v202, %v466
      %v621 = vadd.f32 %v203, %v468
      %v622 = vadd.f32 %v204, %v472
      %v623 = vadd.f32 %v205, %v474
      %v624 = vadd.f32 %v206, %v478
      %v625 = vadd.f32 %v207, %v480
      %v626 = vadd.f32 %v208, %v484
      %v627 = vadd.f32 %v209, %v486
      %v628 = vadd.f32 %v210, %v490
      %v629 = vadd.f32 %v211, %v492
      %v630 = vadd.f32 %v212, %v496
      %v631 = vadd.f32 %v213, %v498
      %v632 = vadd.f32 %v214, %v502
      %v633 = vadd.f32 %v215, %v504
      %v634 = vadd.f32 %v216, %v508
      %v635 = vadd.f32 %v217, %v510
      %v636 = vadd.f32 %v218, %v514
      %v637 = vadd.f32 %v219, %v516
      %v638 = vadd.f32 %v220, %v520
      %v639 = vadd.f32 %v221, %v522
      %v640 = vadd.f32 %v222, %v526
      %v641 = vadd.f32 %v223, %v528
      %v642 = vadd.f32 %v224, %v532
      %v643 = vadd.f32 %v225, %v534
      %v644 = vadd.f32 %v226, %v538
      %v645 = vadd.f32 %v227, %v540
      %v646 = vadd.f32 %v228, %v544
      %v647 = vadd.f32 %v229, %v546
      %v648 = vadd.f32 %v230, %v550
      %v649 = vadd.f32 %v231, %v552
      %v650 = vadd.f32 %v232, %v556
      %v651 = vadd.f32 %v233, %v558
      %v652 = vadd.f32 %v234, %v562
      %v653 = vadd.f32 %v235, %v564
      %v654 = vadd.f32 %v236, %v568
      %v655 = vadd.f32 %v237, %v570
      %v656 = vadd.f32 %v238, %v574
      %v657 = vadd.f32 %v239, %v576
      %v658 = vadd.f32 %v240, %v580
      %v659 = vadd.f32 %v241, %v582
      %v660 = vadd.f32 %v242, %v586
      %v661 = vadd.f32 %v243, %v588
      %v662 = vadd.f32 %v244, %v592
      %v663 = vadd.f32 %v245, %v594
      %v664 = vadd.f32 %v246, %v598
      %v665 = vadd.f32 %v247, %v600
      %666 = vst [vmem:[#allocation2] sm:$0xff] %v602
      %667 = vst [vmem:[#allocation2 + $0x8] sm:$0xff] %v603
      %668 = vst [vmem:[#allocation2 + $0x10] sm:$0xff] %v604
      %669 = vst [vmem:[#allocation2 + $0x18] sm:$0xff] %v605
      %670 = vst [vmem:[#allocation2 + $0x20] sm:$0xff] %v606
      %671 = vst [vmem:[#allocation2 + $0x28] sm:$0xff] %v607
      %672 = vst [vmem:[#allocation2 + $0x30] sm:$0xff] %v608
      %673 = vst [vmem:[#allocation2 + $0x38] sm:$0xff] %v609
      %674 = vst [vmem:[#allocation2 + $0x40] sm:$0xff] %v610
      %675 = vst [vmem:[#allocation2 + $0x48] sm:$0xff] %v611
      %676 = vst [vmem:[#allocation2 + $0x50] sm:$0xff] %v612
      %677 = vst [vmem:[#allocation2 + $0x58] sm:$0xff] %v613
      %678 = vst [vmem:[#allocation2 + $0x60] sm:$0xff] %v614
      %679 = vst [vmem:[#allocation2 + $0x68] sm:$0xff] %v615
      %680 = vst [vmem:[#allocation2 + $0x70] sm:$0xff] %v616
      %681 = vst [vmem:[#allocation2 + $0x78] sm:$0xff] %v617
      %682 = vst [vmem:[#allocation2 + $0x80] sm:$0xff] %v618
      %683 = vst [vmem:[#allocation2 + $0x88] sm:$0xff] %v619
      %684 = vst [vmem:[#allocation2 + $0x90] sm:$0xff] %v620
      %685 = vst [vmem:[#allocation2 + $0x98] sm:$0xff] %v621
      %686 = vst [vmem:[#allocation2 + $0xa0] sm:$0xff] %v622
      %687 = vst [vmem:[#allocation2 + $0xa8] sm:$0xff] %v623
      %688 = vst [vmem:[#allocation2 + $0xb0] sm:$0xff] %v624
      %689 = vst [vmem:[#allocation2 + $0xb8] sm:$0xff] %v625
      %690 = vst [vmem:[#allocation2 + $0xc0] sm:$0xff] %v626
      %691 = vst [vmem:[#allocation2 + $0xc8] sm:$0xff] %v627
      %692 = vst [vmem:[#allocation2 + $0xd0] sm:$0xff] %v628
      %693 = vst [vmem:[#allocation2 + $0xd8] sm:$0xff] %v629
      %694 = vst [vmem:[#allocation2 + $0xe0] sm:$0xff] %v630
      %695 = vst [vmem:[#allocation2 + $0xe8] sm:$0xff] %v631
      %696 = vst [vmem:[#allocation2 + $0xf0] sm:$0xff] %v632
      %697 = vst [vmem:[#allocation2 + $0xf8] sm:$0xff] %v633
      %698 = vst [vmem:[#allocation2 + $0x100] sm:$0xff] %v634
      %699 = vst [vmem:[#allocation2 + $0x108] sm:$0xff] %v635
      %700 = vst [vmem:[#allocation2 + $0x110] sm:$0xff] %v636
      %701 = vst [vmem:[#allocation2 + $0x118] sm:$0xff] %v637
      %702 = vst [vmem:[#allocation2 + $0x120] sm:$0xff] %v638
      %703 = vst [vmem:[#allocation2 + $0x128] sm:$0xff] %v639
      %704 = vst [vmem:[#allocation2 + $0x130] sm:$0xff] %v640
      %705 = vst [vmem:[#allocation2 + $0x138] sm:$0xff] %v641
      %706 = vst [vmem:[#allocation2 + $0x140] sm:$0xff] %v642
      %707 = vst [vmem:[#allocation2 + $0x148] sm:$0xff] %v643
      %708 = vst [vmem:[#allocation2 + $0x150] sm:$0xff] %v644
      %709 = vst [vmem:[#allocation2 + $0x158] sm:$0xff] %v645
      %710 = vst [vmem:[#allocation2 + $0x160] sm:$0xff] %v646
      %711 = vst [vmem:[#allocation2 + $0x168] sm:$0xff] %v647
      %712 = vst [vmem:[#allocation2 + $0x170] sm:$0xff] %v648
      %713 = vst [vmem:[#allocation2 + $0x178] sm:$0xff] %v649
      %714 = vst [vmem:[#allocation2 + $0x180] sm:$0xff] %v650
      %715 = vst [vmem:[#allocation2 + $0x188] sm:$0xff] %v651
      %716 = vst [vmem:[#allocation2 + $0x190] sm:$0xff] %v652
      %717 = vst [vmem:[#allocation2 + $0x198] sm:$0xff] %v653
      %718 = vst [vmem:[#allocation2 + $0x1a0] sm:$0xff] %v654
      %719 = vst [vmem:[#allocation2 + $0x1a8] sm:$0xff] %v655
      %720 = vst [vmem:[#allocation2 + $0x1b0] sm:$0xff] %v656
      %721 = vst [vmem:[#allocation2 + $0x1b8] sm:$0xff] %v657
      %722 = vst [vmem:[#allocation2 + $0x1c0] sm:$0xff] %v658
      %723 = vst [vmem:[#allocation2 + $0x1c8] sm:$0xff] %v659
      %724 = vst [vmem:[#allocation2 + $0x1d0] sm:$0xff] %v660
      %725 = vst [vmem:[#allocation2 + $0x1d8] sm:$0xff] %v661
      %726 = vst [vmem:[#allocation2 + $0x1e0] sm:$0xff] %v662
      %727 = vst [vmem:[#allocation2 + $0x1e8] sm:$0xff] %v663
      %728 = vst [vmem:[#allocation2 + $0x1f0] sm:$0xff] %v664
      %729 = vst [vmem:[#allocation2 + $0x1f8] sm:$0xff] %v665
      %v730 = vld [vmem:[%s1] sm:$0xff]
      %v731 = vld [vmem:[%s1 + $0x8] sm:$0xff]
      %v732 = vld [vmem:[%s1 + $0x10] sm:$0xff]
      %v733 = vld [vmem:[%s1 + $0x18] sm:$0xff]
      %v734 = vld [vmem:[%s1 + $0x20] sm:$0xff]
      %v735 = vld [vmem:[%s1 + $0x28] sm:$0xff]
      %v736 = vld [vmem:[%s1 + $0x30] sm:$0xff]
      %v737 = vld [vmem:[%s1 + $0x38] sm:$0xff]
      %v738 = vld [vmem:[%s1 + $0x40] sm:$0xff]
      %v739 = vld [vmem:[%s1 + $0x48] sm:$0xff]
      %v740 = vld [vmem:[%s1 + $0x50] sm:$0xff]
      %v741 = vld [vmem:[%s1 + $0x58] sm:$0xff]
      %v742 = vld [vmem:[%s1 + $0x60] sm:$0xff]
      %v743 = vld [vmem:[%s1 + $0x68] sm:$0xff]
      %v744 = vld [vmem:[%s1 + $0x70] sm:$0xff]
      %v745 = vld [vmem:[%s1 + $0x78] sm:$0xff]
      %v746 = vld [vmem:[%s1 + $0x80] sm:$0xff]
      %v747 = vld [vmem:[%s1 + $0x88] sm:$0xff]
      %v748 = vld [vmem:[%s1 + $0x90] sm:$0xff]
      %v749 = vld [vmem:[%s1 + $0x98] sm:$0xff]
      %v750 = vld [vmem:[%s1 + $0xa0] sm:$0xff]
      %v751 = vld [vmem:[%s1 + $0xa8] sm:$0xff]
      %v752 = vld [vmem:[%s1 + $0xb0] sm:$0xff]
      %v753 = vld [vmem:[%s1 + $0xb8] sm:$0xff]
      %v754 = vld [vmem:[%s1 + $0xc0] sm:$0xff]
      %v755 = vld [vmem:[%s1 + $0xc8] sm:$0xff]
      %v756 = vld [vmem:[%s1 + $0xd0] sm:$0xff]
      %v757 = vld [vmem:[%s1 + $0xd8] sm:$0xff]
      %v758 = vld [vmem:[%s1 + $0xe0] sm:$0xff]
      %v759 = vld [vmem:[%s1 + $0xe8] sm:$0xff]
      %v760 = vld [vmem:[%s1 + $0xf0] sm:$0xff]
      %v761 = vld [vmem:[%s1 + $0xf8] sm:$0xff]
      %v762 = vld [vmem:[#allocation4] sm:$0xff]
      %v763 = vld [vmem:[#allocation4 + $0x8] sm:$0xff]
      %v764 = vld [vmem:[#allocation4 + $0x10] sm:$0xff]
      %v765 = vld [vmem:[#allocation4 + $0x18] sm:$0xff]
      %v766 = vld [vmem:[#allocation4 + $0x20] sm:$0xff]
      %v767 = vld [vmem:[#allocation4 + $0x28] sm:$0xff]
      %v768 = vld [vmem:[#allocation4 + $0x30] sm:$0xff]
      %v769 = vld [vmem:[#allocation4 + $0x38] sm:$0xff]
      %v770 = vld [vmem:[#allocation4 + $0x40] sm:$0xff]
      %v771 = vld [vmem:[#allocation4 + $0x48] sm:$0xff]
      %v772 = vld [vmem:[#allocation4 + $0x50] sm:$0xff]
      %v773 = vld [vmem:[#allocation4 + $0x58] sm:$0xff]
      %v774 = vld [vmem:[#allocation4 + $0x60] sm:$0xff]
      %v775 = vld [vmem:[#allocation4 + $0x68] sm:$0xff]
      %v776 = vld [vmem:[#allocation4 + $0x70] sm:$0xff]
      %v777 = vld [vmem:[#allocation4 + $0x78] sm:$0xff]
      %v778 = vld [vmem:[#allocation4 + $0x80] sm:$0xff]
      %v779 = vld [vmem:[#allocation4 + $0x88] sm:$0xff]
      %v780 = vld [vmem:[#allocation4 + $0x90] sm:$0xff]
      %v781 = vld [vmem:[#allocation4 + $0x98] sm:$0xff]
      %v782 = vld [vmem:[#allocation4 + $0xa0] sm:$0xff]
      %v783 = vld [vmem:[#allocation4 + $0xa8] sm:$0xff]
      %v784 = vld [vmem:[#allocation4 + $0xb0] sm:$0xff]
      %v785 = vld [vmem:[#allocation4 + $0xb8] sm:$0xff]
      %v786 = vld [vmem:[#allocation4 + $0xc0] sm:$0xff]
      %v787 = vld [vmem:[#allocation4 + $0xc8] sm:$0xff]
      %v788 = vld [vmem:[#allocation4 + $0xd0] sm:$0xff]
      %v789 = vld [vmem:[#allocation4 + $0xd8] sm:$0xff]
      %v790 = vld [vmem:[#allocation4 + $0xe0] sm:$0xff]
      %v791 = vld [vmem:[#allocation4 + $0xe8] sm:$0xff]
      %v792 = vld [vmem:[#allocation4 + $0xf0] sm:$0xff]
      %v793 = vld [vmem:[#allocation4 + $0xf8] sm:$0xff]
      %v794 = vld [vmem:[#allocation4 + $0x100] sm:$0xff]
      %v795 = vld [vmem:[#allocation4 + $0x108] sm:$0xff]
      %v796 = vld [vmem:[#allocation4 + $0x110] sm:$0xff]
      %v797 = vld [vmem:[#allocation4 + $0x118] sm:$0xff]
      %v798 = vld [vmem:[#allocation4 + $0x120] sm:$0xff]
      %v799 = vld [vmem:[#allocation4 + $0x128] sm:$0xff]
      %v800 = vld [vmem:[#allocation4 + $0x130] sm:$0xff]
      %v801 = vld [vmem:[#allocation4 + $0x138] sm:$0xff]
      %v802 = vld [vmem:[#allocation4 + $0x140] sm:$0xff]
      %v803 = vld [vmem:[#allocation4 + $0x148] sm:$0xff]
      %v804 = vld [vmem:[#allocation4 + $0x150] sm:$0xff]
      %v805 = vld [vmem:[#allocation4 + $0x158] sm:$0xff]
      %v806 = vld [vmem:[#allocation4 + $0x160] sm:$0xff]
      %v807 = vld [vmem:[#allocation4 + $0x168] sm:$0xff]
      %v808 = vld [vmem:[#allocation4 + $0x170] sm:$0xff]
      %v809 = vld [vmem:[#allocation4 + $0x178] sm:$0xff]
      %v810 = vld [vmem:[#allocation4 + $0x180] sm:$0xff]
      %v811 = vld [vmem:[#allocation4 + $0x188] sm:$0xff]
      %v812 = vld [vmem:[#allocation4 + $0x190] sm:$0xff]
      %v813 = vld [vmem:[#allocation4 + $0x198] sm:$0xff]
      %v814 = vld [vmem:[#allocation4 + $0x1a0] sm:$0xff]
      %v815 = vld [vmem:[#allocation4 + $0x1a8] sm:$0xff]
      %v816 = vld [vmem:[#allocation4 + $0x1b0] sm:$0xff]
      %v817 = vld [vmem:[#allocation4 + $0x1b8] sm:$0xff]
      %v818 = vld [vmem:[#allocation4 + $0x1c0] sm:$0xff]
      %v819 = vld [vmem:[#allocation4 + $0x1c8] sm:$0xff]
      %v820 = vld [vmem:[#allocation4 + $0x1d0] sm:$0xff]
      %v821 = vld [vmem:[#allocation4 + $0x1d8] sm:$0xff]
      %v822 = vld [vmem:[#allocation4 + $0x1e0] sm:$0xff]
      %v823 = vld [vmem:[#allocation4 + $0x1e8] sm:$0xff]
      %v824 = vld [vmem:[#allocation4 + $0x1f0] sm:$0xff]
      %v825 = vld [vmem:[#allocation4 + $0x1f8] sm:$0xff]
      %v827 = vsel %vm248, %v730, 0
      %v830 = vsel %vm248, %v731, 0
      %v833 = vsel %vm248, %v732, 0
      %v836 = vsel %vm248, %v733, 0
      %v839 = vsel %vm248, %v734, 0
      %v842 = vsel %vm248, %v735, 0
      %v845 = vsel %vm248, %v736, 0
      %v848 = vsel %vm248, %v737, 0
      %v851 = vsel %vm248, %v738, 0
      %v854 = vsel %vm248, %v739, 0
      %v857 = vsel %vm248, %v740, 0
      %v860 = vsel %vm248, %v741, 0
      %v863 = vsel %vm248, %v742, 0
      %v866 = vsel %vm248, %v743, 0
      %v869 = vsel %vm248, %v744, 0
      %v872 = vsel %vm248, %v745, 0
      %v875 = vsel %vm248, %v746, 0
      %v878 = vsel %vm248, %v747, 0
      %v881 = vsel %vm248, %v748, 0
      %v884 = vsel %vm248, %v749, 0
      %v887 = vsel %vm248, %v750, 0
      %v890 = vsel %vm248, %v751, 0
      %v893 = vsel %vm248, %v752, 0
      %v896 = vsel %vm248, %v753, 0
      %v899 = vsel %vm248, %v754, 0
      %v902 = vsel %vm248, %v755, 0
      %v905 = vsel %vm248, %v756, 0
      %v908 = vsel %vm248, %v757, 0
      %v911 = vsel %vm248, %v758, 0
      %v914 = vsel %vm248, %v759, 0
      %v917 = vsel %vm248, %v760, 0
      %v920 = vsel %vm248, %v761, 0
      %922 = vmatprep.subr.mxu0 0.0
      %923 = vmatpush1.xpose.msra.mxu0 %v827
      %924 = vmatprep.subr.mxu0 0.0
      %925 = vmatpush1.xpose.msra.mxu0 %v830
      %926 = vmatprep.subr.mxu0 0.0
      %927 = vmatpush1.xpose.msra.mxu0 %v833
      %928 = vmatprep.subr.mxu0 0.0
      %929 = vmatpush1.xpose.msra.mxu0 %v836
      %930 = vmatprep.subr.mxu0 0.0
      %931 = vmatpush1.xpose.msra.mxu0 %v839
      %932 = vmatprep.subr.mxu0 0.0
      %933 = vmatpush1.xpose.msra.mxu0 %v842
      %934 = vmatprep.subr.mxu0 0.0
      %935 = vmatpush1.xpose.msra.mxu0 %v845
      %936 = vmatprep.subr.mxu0 0.0
      %937 = vmatpush1.xpose.msra.mxu0 %v848
      %938 = vmatprep.subr.mxu0 0.0
      %939 = vmatpush1.xpose.msra.mxu0 %v851
      %940 = vmatprep.subr.mxu0 0.0
      %941 = vmatpush1.xpose.msra.mxu0 %v854
      %942 = vmatprep.subr.mxu0 0.0
      %943 = vmatpush1.xpose.msra.mxu0 %v857
      %944 = vmatprep.subr.mxu0 0.0
      %945 = vmatpush1.xpose.msra.mxu0 %v860
      %946 = vmatprep.subr.mxu0 0.0
      %947 = vmatpush1.xpose.msra.mxu0 %v863
      %948 = vmatprep.subr.mxu0 0.0
      %949 = vmatpush1.xpose.msra.mxu0 %v866
      %950 = vmatprep.subr.mxu0 0.0
      %951 = vmatpush1.xpose.msra.mxu0 %v869
      %952 = vmatprep.subr.mxu0 0.0
      %953 = vmatpush1.xpose.msra.mxu0 %v872
      %954 = vmatprep.subr.mxu0 0.0
      %955 = vmatpush1.xpose.msra.mxu0 %v875
      %956 = vmatprep.subr.mxu0 0.0
      %957 = vmatpush1.xpose.msra.mxu0 %v878
      %958 = vmatprep.subr.mxu0 0.0
      %959 = vmatpush1.xpose.msra.mxu0 %v881
      %960 = vmatprep.subr.mxu0 0.0
      %961 = vmatpush1.xpose.msra.mxu0 %v884
      %962 = vmatprep.subr.mxu0 0.0
      %963 = vmatpush1.xpose.msra.mxu0 %v887
      %964 = vmatprep.subr.mxu0 0.0
      %965 = vmatpush1.xpose.msra.mxu0 %v890
      %966 = vmatprep.subr.mxu0 0.0
      %967 = vmatpush1.xpose.msra.mxu0 %v893
      %968 = vmatprep.subr.mxu0 0.0
      %969 = vmatpush1.xpose.msra.mxu0 %v896
      %970 = vmatprep.subr.mxu0 0.0
      %971 = vmatpush1.xpose.msra.mxu0 %v899
      %972 = vmatprep.subr.mxu0 0.0
      %973 = vmatpush1.xpose.msra.mxu0 %v902
      %974 = vmatprep.subr.mxu0 0.0
      %975 = vmatpush1.xpose.msra.mxu0 %v905
      %976 = vmatprep.subr.mxu0 0.0
      %977 = vmatpush1.xpose.msra.mxu0 %v908
      %978 = vmatprep.subr.mxu0 0.0
      %979 = vmatpush1.xpose.msra.mxu0 %v911
      %980 = vmatprep.subr.mxu0 0.0
      %981 = vmatpush1.xpose.msra.mxu0 %v914
      %982 = vmatprep.subr.mxu0 0.0
      %983 = vmatpush1.xpose.msra.mxu0 %v917
      %984 = vmatprep.subr.mxu0 0.0
      %985 = vmatpush1.xpose.msra.mxu0 %v920
      %986 = vmatprep.mubr.f32.mxu0 0.0
      %987 = vmatmul.mubr.f32.gmra.mrb[0].mxu0 %v827
      %v988 = vpop.f32.mrb[0].mxu0
      %v989 = vadd.f32 0.0, %v988
      %v990 = vpop.f32.mrb[0].mxu0
      %v991 = vadd.f32 0.0, %v990
      %992 = vmatprep.mubr.f32.mxu0 0.0
      %993 = vmatmul.mubr.f32.gmra.mrb[0].mxu0 %v830
      %v994 = vpop.f32.mrb[0].mxu0
      %v995 = vadd.f32 0.0, %v994
      %v996 = vpop.f32.mrb[0].mxu0
      %v997 = vadd.f32 0.0, %v996
      %998 = vmatprep.mubr.f32.mxu0 0.0
      %999 = vmatmul.mubr.f32.gmra.mrb[0].mxu0 %v833
      %v1000 = vpop.f32.mrb[0].mxu0
      %v1001 = vadd.f32 0.0, %v1000
      %v1002 = vpop.f32.mrb[0].mxu0
      %v1003 = vadd.f32 0.0, %v1002
      %1004 = vmatprep.mubr.f32.mxu0 0.0
      %1005 = vmatmul.mubr.f32.gmra.mrb[0].mxu0 %v836
      %v1006 = vpop.f32.mrb[0].mxu0
      %v1007 = vadd.f32 0.0, %v1006
      %v1008 = vpop.f32.mrb[0].mxu0
      %v1009 = vadd.f32 0.0, %v1008
      %1010 = vmatprep.mubr.f32.mxu0 0.0
      %1011 = vmatmul.mubr.f32.gmra.mrb[0].mxu0 %v839
      %v1012 = vpop.f32.mrb[0].mxu0
      %v1013 = vadd.f32 0.0, %v1012
      %v1014 = vpop.f32.mrb[0].mxu0
      %v1015 = vadd.f32 0.0, %v1014
      %1016 = vmatprep.mubr.f32.mxu0 0.0
      %1017 = vmatmul.mubr.f32.gmra.mrb[0].mxu0 %v842
      %v1018 = vpop.f32.mrb[0].mxu0
      %v1019 = vadd.f32 0.0, %v1018
      %v1020 = vpop.f32.mrb[0].mxu0
      %v1021 = vadd.f32 0.0, %v1020
      %1022 = vmatprep.mubr.f32.mxu0 0.0
      %1023 = vmatmul.mubr.f32.gmra.mrb[0].mxu0 %v845
      %v1024 = vpop.f32.mrb[0].mxu0
      %v1025 = vadd.f32 0.0, %v1024
      %v1026 = vpop.f32.mrb[0].mxu0
      %v1027 = vadd.f32 0.0, %v1026
      %1028 = vmatprep.mubr.f32.mxu0 0.0
      %1029 = vmatmul.mubr.f32.gmra.mrb[0].mxu0 %v848
      %v1030 = vpop.f32.mrb[0].mxu0
      %v1031 = vadd.f32 0.0, %v1030
      %v1032 = vpop.f32.mrb[0].mxu0
      %v1033 = vadd.f32 0.0, %v1032
      %1034 = vmatprep.mubr.f32.mxu0 0.0
      %1035 = vmatmul.mubr.f32.gmra.mrb[0].mxu0 %v851
      %v1036 = vpop.f32.mrb[0].mxu0
      %v1037 = vadd.f32 0.0, %v1036
      %v1038 = vpop.f32.mrb[0].mxu0
      %v1039 = vadd.f32 0.0, %v1038
      %1040 = vmatprep.mubr.f32.mxu0 0.0
      %1041 = vmatmul.mubr.f32.gmra.mrb[0].mxu0 %v854
      %v1042 = vpop.f32.mrb[0].mxu0
      %v1043 = vadd.f32 0.0, %v1042
      %v1044 = vpop.f32.mrb[0].mxu0
      %v1045 = vadd.f32 0.0, %v1044
      %1046 = vmatprep.mubr.f32.mxu0 0.0
      %1047 = vmatmul.mubr.f32.gmra.mrb[0].mxu0 %v857
      %v1048 = vpop.f32.mrb[0].mxu0
      %v1049 = vadd.f32 0.0, %v1048
      %v1050 = vpop.f32.mrb[0].mxu0
      %v1051 = vadd.f32 0.0, %v1050
      %1052 = vmatprep.mubr.f32.mxu0 0.0
      %1053 = vmatmul.mubr.f32.gmra.mrb[0].mxu0 %v860
      %v1054 = vpop.f32.mrb[0].mxu0
      %v1055 = vadd.f32 0.0, %v1054
      %v1056 = vpop.f32.mrb[0].mxu0
      %v1057 = vadd.f32 0.0, %v1056
      %1058 = vmatprep.mubr.f32.mxu0 0.0
      %1059 = vmatmul.mubr.f32.gmra.mrb[0].mxu0 %v863
      %v1060 = vpop.f32.mrb[0].mxu0
      %v1061 = vadd.f32 0.0, %v1060
      %v1062 = vpop.f32.mrb[0].mxu0
      %v1063 = vadd.f32 0.0, %v1062
      %1064 = vmatprep.mubr.f32.mxu0 0.0
      %1065 = vmatmul.mubr.f32.gmra.mrb[0].mxu0 %v866
      %v1066 = vpop.f32.mrb[0].mxu0
      %v1067 = vadd.f32 0.0, %v1066
      %v1068 = vpop.f32.mrb[0].mxu0
      %v1069 = vadd.f32 0.0, %v1068
      %1070 = vmatprep.mubr.f32.mxu0 0.0
      %1071 = vmatmul.mubr.f32.gmra.mrb[0].mxu0 %v869
      %v1072 = vpop.f32.mrb[0].mxu0
      %v1073 = vadd.f32 0.0, %v1072
      %v1074 = vpop.f32.mrb[0].mxu0
      %v1075 = vadd.f32 0.0, %v1074
      %1076 = vmatprep.mubr.f32.mxu0 0.0
      %1077 = vmatmul.mubr.f32.gmra.mrb[0].mxu0 %v872
      %v1078 = vpop.f32.mrb[0].mxu0
      %v1079 = vadd.f32 0.0, %v1078
      %v1080 = vpop.f32.mrb[0].mxu0
      %v1081 = vadd.f32 0.0, %v1080
      %1082 = vmatprep.mubr.f32.mxu0 0.0
      %1083 = vmatmul.mubr.f32.gmra.mrb[0].mxu0 %v875
      %v1084 = vpop.f32.mrb[0].mxu0
      %v1085 = vadd.f32 0.0, %v1084
      %v1086 = vpop.f32.mrb[0].mxu0
      %v1087 = vadd.f32 0.0, %v1086
      %1088 = vmatprep.mubr.f32.mxu0 0.0
      %1089 = vmatmul.mubr.f32.gmra.mrb[0].mxu0 %v878
      %v1090 = vpop.f32.mrb[0].mxu0
      %v1091 = vadd.f32 0.0, %v1090
      %v1092 = vpop.f32.mrb[0].mxu0
      %v1093 = vadd.f32 0.0, %v1092
      %1094 = vmatprep.mubr.f32.mxu0 0.0
      %1095 = vmatmul.mubr.f32.gmra.mrb[0].mxu0 %v881
      %v1096 = vpop.f32.mrb[0].mxu0
      %v1097 = vadd.f32 0.0, %v1096
      %v1098 = vpop.f32.mrb[0].mxu0
      %v1099 = vadd.f32 0.0, %v1098
      %1100 = vmatprep.mubr.f32.mxu0 0.0
      %1101 = vmatmul.mubr.f32.gmra.mrb[0].mxu0 %v884
      %v1102 = vpop.f32.mrb[0].mxu0
      %v1103 = vadd.f32 0.0, %v1102
      %v1104 = vpop.f32.mrb[0].mxu0
      %v1105 = vadd.f32 0.0, %v1104
      %1106 = vmatprep.mubr.f32.mxu0 0.0
      %1107 = vmatmul.mubr.f32.gmra.mrb[0].mxu0 %v887
      %v1108 = vpop.f32.mrb[0].mxu0
      %v1109 = vadd.f32 0.0, %v1108
      %v1110 = vpop.f32.mrb[0].mxu0
      %v1111 = vadd.f32 0.0, %v1110
      %1112 = vmatprep.mubr.f32.mxu0 0.0
      %1113 = vmatmul.mubr.f32.gmra.mrb[0].mxu0 %v890
      %v1114 = vpop.f32.mrb[0].mxu0
      %v1115 = vadd.f32 0.0, %v1114
      %v1116 = vpop.f32.mrb[0].mxu0
      %v1117 = vadd.f32 0.0, %v1116
      %1118 = vmatprep.mubr.f32.mxu0 0.0
      %1119 = vmatmul.mubr.f32.gmra.mrb[0].mxu0 %v893
      %v1120 = vpop.f32.mrb[0].mxu0
      %v1121 = vadd.f32 0.0, %v1120
      %v1122 = vpop.f32.mrb[0].mxu0
      %v1123 = vadd.f32 0.0, %v1122
      %1124 = vmatprep.mubr.f32.mxu0 0.0
      %1125 = vmatmul.mubr.f32.gmra.mrb[0].mxu0 %v896
      %v1126 = vpop.f32.mrb[0].mxu0
      %v1127 = vadd.f32 0.0, %v1126
      %v1128 = vpop.f32.mrb[0].mxu0
      %v1129 = vadd.f32 0.0, %v1128
      %1130 = vmatprep.mubr.f32.mxu0 0.0
      %1131 = vmatmul.mubr.f32.gmra.mrb[0].mxu0 %v899
      %v1132 = vpop.f32.mrb[0].mxu0
      %v1133 = vadd.f32 0.0, %v1132
      %v1134 = vpop.f32.mrb[0].mxu0
      %v1135 = vadd.f32 0.0, %v1134
      %1136 = vmatprep.mubr.f32.mxu0 0.0
      %1137 = vmatmul.mubr.f32.gmra.mrb[0].mxu0 %v902
      %v1138 = vpop.f32.mrb[0].mxu0
      %v1139 = vadd.f32 0.0, %v1138
      %v1140 = vpop.f32.mrb[0].mxu0
      %v1141 = vadd.f32 0.0, %v1140
      %1142 = vmatprep.mubr.f32.mxu0 0.0
      %1143 = vmatmul.mubr.f32.gmra.mrb[0].mxu0 %v905
      %v1144 = vpop.f32.mrb[0].mxu0
      %v1145 = vadd.f32 0.0, %v1144
      %v1146 = vpop.f32.mrb[0].mxu0
      %v1147 = vadd.f32 0.0, %v1146
      %1148 = vmatprep.mubr.f32.mxu0 0.0
      %1149 = vmatmul.mubr.f32.gmra.mrb[0].mxu0 %v908
      %v1150 = vpop.f32.mrb[0].mxu0
      %v1151 = vadd.f32 0.0, %v1150
      %v1152 = vpop.f32.mrb[0].mxu0
      %v1153 = vadd.f32 0.0, %v1152
      %1154 = vmatprep.mubr.f32.mxu0 0.0
      %1155 = vmatmul.mubr.f32.gmra.mrb[0].mxu0 %v911
      %v1156 = vpop.f32.mrb[0].mxu0
      %v1157 = vadd.f32 0.0, %v1156
      %v1158 = vpop.f32.mrb[0].mxu0
      %v1159 = vadd.f32 0.0, %v1158
      %1160 = vmatprep.mubr.f32.mxu0 0.0
      %1161 = vmatmul.mubr.f32.gmra.mrb[0].mxu0 %v914
      %v1162 = vpop.f32.mrb[0].mxu0
      %v1163 = vadd.f32 0.0, %v1162
      %v1164 = vpop.f32.mrb[0].mxu0
      %v1165 = vadd.f32 0.0, %v1164
      %1166 = vmatprep.mubr.f32.mxu0 0.0
      %1167 = vmatmul.mubr.f32.gmra.mrb[0].mxu0 %v917
      %v1168 = vpop.f32.mrb[0].mxu0
      %v1169 = vadd.f32 0.0, %v1168
      %v1170 = vpop.f32.mrb[0].mxu0
      %v1171 = vadd.f32 0.0, %v1170
      %1172 = vmatprep.mubr.f32.mxu0 0.0
      %1173 = vmatmul.mubr.f32.gmra.mrb[0].mxu0 %v920
      %v1174 = vpop.f32.mrb[0].mxu0
      %v1175 = vadd.f32 0.0, %v1174
      %v1176 = vpop.f32.mrb[0].mxu0
      %v1177 = vadd.f32 0.0, %v1176
      %1178 = vdwg.mxu0
      %v1179 = vadd.f32 %v762, %v989
      %v1180 = vadd.f32 %v763, %v991
      %v1181 = vadd.f32 %v764, %v995
      %v1182 = vadd.f32 %v765, %v997
      %v1183 = vadd.f32 %v766, %v1001
      %v1184 = vadd.f32 %v767, %v1003
      %v1185 = vadd.f32 %v768, %v1007
      %v1186 = vadd.f32 %v769, %v1009
      %v1187 = vadd.f32 %v770, %v1013
      %v1188 = vadd.f32 %v771, %v1015
      %v1189 = vadd.f32 %v772, %v1019
      %v1190 = vadd.f32 %v773, %v1021
      %v1191 = vadd.f32 %v774, %v1025
      %v1192 = vadd.f32 %v775, %v1027
      %v1193 = vadd.f32 %v776, %v1031
      %v1194 = vadd.f32 %v777, %v1033
      %v1195 = vadd.f32 %v778, %v1037
      %v1196 = vadd.f32 %v779, %v1039
      %v1197 = vadd.f32 %v780, %v1043
      %v1198 = vadd.f32 %v781, %v1045
      %v1199 = vadd.f32 %v782, %v1049
      %v1200 = vadd.f32 %v783, %v1051
      %v1201 = vadd.f32 %v784, %v1055
      %v1202 = vadd.f32 %v785, %v1057
      %v1203 = vadd.f32 %v786, %v1061
      %v1204 = vadd.f32 %v787, %v1063
      %v1205 = vadd.f32 %v788, %v1067
      %v1206 = vadd.f32 %v789, %v1069
      %v1207 = vadd.f32 %v790, %v1073
      %v1208 = vadd.f32 %v791, %v1075
      %v1209 = vadd.f32 %v792, %v1079
      %v1210 = vadd.f32 %v793, %v1081
      %v1211 = vadd.f32 %v794, %v1085
      %v1212 = vadd.f32 %v795, %v1087
      %v1213 = vadd.f32 %v796, %v1091
      %v1214 = vadd.f32 %v797, %v1093
      %v1215 = vadd.f32 %v798, %v1097
      %v1216 = vadd.f32 %v799, %v1099
      %v1217 = vadd.f32 %v800, %v1103
      %v1218 = vadd.f32 %v801, %v1105
      %v1219 = vadd.f32 %v802, %v1109
      %v1220 = vadd.f32 %v803, %v1111
      %v1221 = vadd.f32 %v804, %v1115
      %v1222 = vadd.f32 %v805, %v1117
      %v1223 = vadd.f32 %v806, %v1121
      %v1224 = vadd.f32 %v807, %v1123
      %v1225 = vadd.f32 %v808, %v1127
      %v1226 = vadd.f32 %v809, %v1129
      %v1227 = vadd.f32 %v810, %v1133
      %v1228 = vadd.f32 %v811, %v1135
      %v1229 = vadd.f32 %v812, %v1139
      %v1230 = vadd.f32 %v813, %v1141
      %v1231 = vadd.f32 %v814, %v1145
      %v1232 = vadd.f32 %v815, %v1147
      %v1233 = vadd.f32 %v816, %v1151
      %v1234 = vadd.f32 %v817, %v1153
      %v1235 = vadd.f32 %v818, %v1157
      %v1236 = vadd.f32 %v819, %v1159
      %v1237 = vadd.f32 %v820, %v1163
      %v1238 = vadd.f32 %v821, %v1165
      %v1239 = vadd.f32 %v822, %v1169
      %v1240 = vadd.f32 %v823, %v1171
      %v1241 = vadd.f32 %v824, %v1175
      %v1242 = vadd.f32 %v825, %v1177
      %1243 = vst [vmem:[#allocation4] sm:$0xff] %v1179
      %1244 = vst [vmem:[#allocation4 + $0x8] sm:$0xff] %v1180
      %1245 = vst [vmem:[#allocation4 + $0x10] sm:$0xff] %v1181
      %1246 = vst [vmem:[#allocation4 + $0x18] sm:$0xff] %v1182
      %1247 = vst [vmem:[#allocation4 + $0x20] sm:$0xff] %v1183
      %1248 = vst [vmem:[#allocation4 + $0x28] sm:$0xff] %v1184
      %1249 = vst [vmem:[#allocation4 + $0x30] sm:$0xff] %v1185
      %1250 = vst [vmem:[#allocation4 + $0x38] sm:$0xff] %v1186
      %1251 = vst [vmem:[#allocation4 + $0x40] sm:$0xff] %v1187
      %1252 = vst [vmem:[#allocation4 + $0x48] sm:$0xff] %v1188
      %1253 = vst [vmem:[#allocation4 + $0x50] sm:$0xff] %v1189
      %1254 = vst [vmem:[#allocation4 + $0x58] sm:$0xff] %v1190
      %1255 = vst [vmem:[#allocation4 + $0x60] sm:$0xff] %v1191
      %1256 = vst [vmem:[#allocation4 + $0x68] sm:$0xff] %v1192
      %1257 = vst [vmem:[#allocation4 + $0x70] sm:$0xff] %v1193
      %1258 = vst [vmem:[#allocation4 + $0x78] sm:$0xff] %v1194
      %1259 = vst [vmem:[#allocation4 + $0x80] sm:$0xff] %v1195
      %1260 = vst [vmem:[#allocation4 + $0x88] sm:$0xff] %v1196
      %1261 = vst [vmem:[#allocation4 + $0x90] sm:$0xff] %v1197
      %1262 = vst [vmem:[#allocation4 + $0x98] sm:$0xff] %v1198
      %1263 = vst [vmem:[#allocation4 + $0xa0] sm:$0xff] %v1199
      %1264 = vst [vmem:[#allocation4 + $0xa8] sm:$0xff] %v1200
      %1265 = vst [vmem:[#allocation4 + $0xb0] sm:$0xff] %v1201
      %1266 = vst [vmem:[#allocation4 + $0xb8] sm:$0xff] %v1202
      %1267 = vst [vmem:[#allocation4 + $0xc0] sm:$0xff] %v1203
      %1268 = vst [vmem:[#allocation4 + $0xc8] sm:$0xff] %v1204
      %1269 = vst [vmem:[#allocation4 + $0xd0] sm:$0xff] %v1205
      %1270 = vst [vmem:[#allocation4 + $0xd8] sm:$0xff] %v1206
      %1271 = vst [vmem:[#allocation4 + $0xe0] sm:$0xff] %v1207
      %1272 = vst [vmem:[#allocation4 + $0xe8] sm:$0xff] %v1208
      %1273 = vst [vmem:[#allocation4 + $0xf0] sm:$0xff] %v1209
      %1274 = vst [vmem:[#allocation4 + $0xf8] sm:$0xff] %v1210
      %1275 = vst [vmem:[#allocation4 + $0x100] sm:$0xff] %v1211
      %1276 = vst [vmem:[#allocation4 + $0x108] sm:$0xff] %v1212
      %1277 = vst [vmem:[#allocation4 + $0x110] sm:$0xff] %v1213
      %1278 = vst [vmem:[#allocation4 + $0x118] sm:$0xff] %v1214
      %1279 = vst [vmem:[#allocation4 + $0x120] sm:$0xff] %v1215
      %1280 = vst [vmem:[#allocation4 + $0x128] sm:$0xff] %v1216
      %1281 = vst [vmem:[#allocation4 + $0x130] sm:$0xff] %v1217
      %1282 = vst [vmem:[#allocation4 + $0x138] sm:$0xff] %v1218
      %1283 = vst [vmem:[#allocation4 + $0x140] sm:$0xff] %v1219
      %1284 = vst [vmem:[#allocation4 + $0x148] sm:$0xff] %v1220
      %1285 = vst [vmem:[#allocation4 + $0x150] sm:$0xff] %v1221
      %1286 = vst [vmem:[#allocation4 + $0x158] sm:$0xff] %v1222
      %1287 = vst [vmem:[#allocation4 + $0x160] sm:$0xff] %v1223
      %1288 = vst [vmem:[#allocation4 + $0x168] sm:$0xff] %v1224
      %1289 = vst [vmem:[#allocation4 + $0x170] sm:$0xff] %v1225
      %1290 = vst [vmem:[#allocation4 + $0x178] sm:$0xff] %v1226
      %1291 = vst [vmem:[#allocation4 + $0x180] sm:$0xff] %v1227
      %1292 = vst [vmem:[#allocation4 + $0x188] sm:$0xff] %v1228
      %1293 = vst [vmem:[#allocation4 + $0x190] sm:$0xff] %v1229
      %1294 = vst [vmem:[#allocation4 + $0x198] sm:$0xff] %v1230
      %1295 = vst [vmem:[#allocation4 + $0x1a0] sm:$0xff] %v1231
      %1296 = vst [vmem:[#allocation4 + $0x1a8] sm:$0xff] %v1232
      %1297 = vst [vmem:[#allocation4 + $0x1b0] sm:$0xff] %v1233
      %1298 = vst [vmem:[#allocation4 + $0x1b8] sm:$0xff] %v1234
      %1299 = vst [vmem:[#allocation4 + $0x1c0] sm:$0xff] %v1235
      %1300 = vst [vmem:[#allocation4 + $0x1c8] sm:$0xff] %v1236
      %1301 = vst [vmem:[#allocation4 + $0x1d0] sm:$0xff] %v1237
      %1302 = vst [vmem:[#allocation4 + $0x1d8] sm:$0xff] %v1238
      %1303 = vst [vmem:[#allocation4 + $0x1e0] sm:$0xff] %v1239
      %1304 = vst [vmem:[#allocation4 + $0x1e8] sm:$0xff] %v1240
      %1305 = vst [vmem:[#allocation4 + $0x1f0] sm:$0xff] %v1241
      %1306 = vst [vmem:[#allocation4 + $0x1f8] sm:$0xff] %v1242
    $region17: #{tpu_custom_call.1} parent=1 // pred_fallthru
      _
    // Predicated region
    $region18: #{tpu_custom_call.1} parent=1 // pred_check
      _
    $region19: #{tpu_custom_call.1} parent=1 // pred_check_branch
      %1308 = sbr.rel (0) target = $region21
    $region20: #{tpu_custom_call.1} parent=1 // pred_region
      %s1310 = ssub.s32 8192, 8192
      %1311 = vsyncadd [#allocation3], %s1310
      %s1312 = sshll.u32 [#allocation2], 4
      %s1313 = int_to_ptr.vmem [resolvable:$true] %s1312
      %1318 = dma.vmem_to_hbm [thread:$0]  %s1313, 8192, %s2, [#allocation3], 256, 256, 16
    $region21: #{tpu_custom_call.1} parent=1 // pred_fallthru
      _
    // Predicated region
    $region22: #{tpu_custom_call.1} parent=1 // pred_check
      _
    $region23: #{tpu_custom_call.1} parent=1 // pred_check_branch
      %1320 = sbr.rel (0) target = $region25
    $region24: #{tpu_custom_call.1} parent=1 // pred_region
      %s1322 = ssub.s32 8192, 8192
      %1323 = vsyncadd [#allocation5], %s1322
      %s1324 = sshll.u32 [#allocation4], 4
      %s1325 = int_to_ptr.vmem [resolvable:$true] %s1324
      %1330 = dma.vmem_to_hbm [thread:$0]  %s1325, 8192, %s3, [#allocation5], 256, 256, 16
    $region25: #{tpu_custom_call.1} parent=1 // pred_fallthru
      _
    // Predicated region
    $region26: #{tpu_custom_call.1} parent=1 // pred_check
      _
    $region27: #{tpu_custom_call.1} parent=1 // pred_check_branch
      %1332 = sbr.rel (0) target = $region29
    $region28: #{tpu_custom_call.1} parent=1 // pred_region
      %1333 = dma.done [#allocation3], 8192
    $region29: #{tpu_custom_call.1} parent=1 // pred_fallthru
      _
    // Predicated region
    $region30: #{tpu_custom_call.1} parent=1 // pred_check
      _
    $region31: #{tpu_custom_call.1} parent=1 // pred_check_branch
      %1335 = sbr.rel (0) target = $region33
    $region32: #{tpu_custom_call.1} parent=1 // pred_region
      %1336 = dma.done [#allocation5], 8192
    $region33: #{tpu_custom_call.1} parent=1 // pred_fallthru
      _
    %1337 = vsyncpa [#allocation3], 1
    %1338 = vsyncpa [#allocation5], 1

</llo_original>
